<compile_context>
chip_gen: v6e
topology: v6e:2x2x1
jax: 0.10.0
libtpu: 0.0.40
codegen_flags: <defaults>
</compile_context>

<pallas_src>
import jax
import jax.numpy as jnp
from jax import lax
from jax.experimental import pallas as pl
from jax.experimental.pallas import tpu as pltpu

# Small, TPU-friendly synthetic sizes consistent with the module.
VOCAB = 64          # vocab_size
EMB = 16            # emb_dim
CTX = 8             # context_size
HID = 128           # linear1 output width (fixed at 128 in the module)
VOCAB_PAD = 128     # lane-dense padded vocab axis for logits / output
TB = 128            # batch tile (128 native on v5e; pass tb=256 on v6e for big B)


def ngram_kernel(ids_ref, w1f_ref, b1_ref, w2t_ref, b2_ref, out_ref):
    tb = ids_ref.shape[0]
    ids = ids_ref[...]                                           # (tb, CTX) int32

    # Per-context 64-lane one-hot segments.  Each segment is built with one
    # int32 compare + one f32 select over only VOCAB lanes, cast to bf16 once,
    # and immediately consumed by a small K=VOCAB MXU push accumulating into
    # the f32 hidden activation.  Live set: 8-vreg iota + 16-vreg accumulator.
    col = lax.broadcasted_iota(jnp.int32, (tb, VOCAB), 1)
    h = jnp.zeros((tb, HID), jnp.float32)
    for c in range(CTX):
        hot = col == ids[:, c:c + 1]                             # (tb, VOCAB) bool
        seg = jnp.where(hot, 1.0, 0.0).astype(jnp.bfloat16)      # single cast
        h = h + jnp.dot(seg, w1f_ref[c],
                        preferred_element_type=jnp.float32)      # (tb, HID)

    h = jnp.maximum(h + b1_ref[...], 0.0)                        # ReLU, f32

    # linear2 on the padded (lane-dense) vocab axis.  Padded weight columns are
    # zero and padded biases are -1e30, so padded lanes vanish in the softmax.
    logits = jnp.dot(h.astype(jnp.bfloat16), w2t_ref[...],
                     preferred_element_type=jnp.float32) + b2_ref[...]  # (tb, VOCAB_PAD)

    # log_softmax over the last axis (f32).
    m = jnp.max(logits, axis=-1, keepdims=True)
    z = logits - m
    lse = jnp.log(jnp.sum(jnp.exp(z), axis=-1, keepdims=True))
    out_ref[...] = z - lse


def prepack_params(emb, w1, b1, w2, b2):
    """One-time weight prepacking (fold embedding into linear1, transpose,
    lane-pad) so the per-call path does no host-graph reshapes/transposes."""
    emb = jnp.asarray(emb, jnp.float32)                           # (VOCAB, EMB)
    w1t = jnp.asarray(w1, jnp.float32).T.reshape(CTX, EMB, HID)   # (CTX, EMB, HID)
    # W1f[c, v, :] = emb[v] @ W1^T[c*EMB:(c+1)*EMB, :]
    w1f = jnp.einsum("ve,ceh->cvh", emb, w1t)                     # (CTX, VOCAB, HID)

    w2t_pad = jnp.zeros((HID, VOCAB_PAD), jnp.float32)
    w2t_pad = w2t_pad.at[:, :VOCAB].set(jnp.asarray(w2, jnp.float32).T)
    b2_pad = jnp.full((1, VOCAB_PAD), -1e30, jnp.float32)
    b2_pad = b2_pad.at[0, :VOCAB].set(jnp.asarray(b2, jnp.float32))

    return (w1f.astype(jnp.bfloat16),
            jnp.asarray(b1, jnp.float32).reshape(1, HID),
            w2t_pad.astype(jnp.bfloat16),
            b2_pad)


def ngram_forward(ids, packed, *, tb=TB):
    """ids: int (B, CTX) token ids; packed: output of prepack_params.
    Returns lane-dense log-probs (B, VOCAB_PAD) float32: columns [0, VOCAB)
    are the real log-probabilities, padded columns hold ~-1e30 (log-prob -inf).
    Consumers should read only the first VOCAB columns (kept padded here to
    avoid an extra HBM round-trip on the output path)."""
    w1f, b1r, w2t, b2r = packed
    B = ids.shape[0]
    pad = (-B) % tb
    if pad:
        # Ragged batch: pad with id 0 rows, drop them after the kernel.
        ids = jnp.concatenate(
            [ids, jnp.zeros((pad, CTX), ids.dtype)], axis=0)
    Bp = B + pad

    out = pl.pallas_call(
        ngram_kernel,
        out_shape=jax.ShapeDtypeStruct((Bp, VOCAB_PAD), jnp.float32),
        grid_spec=pltpu.PrefetchScalarGridSpec(
            num_scalar_prefetch=0,
            grid=(Bp // tb,),
            in_specs=[
                # Only the ids tile steps with the grid.
                pl.BlockSpec((tb, CTX), lambda i: (i, 0)),
                # Weights / biases: constant blocks -> fetched once, VMEM-resident.
                pl.BlockSpec((CTX, VOCAB, HID), lambda i: (0, 0, 0)),
                pl.BlockSpec((1, HID), lambda i: (0, 0)),
                pl.BlockSpec((HID, VOCAB_PAD), lambda i: (0, 0)),
                pl.BlockSpec((1, VOCAB_PAD), lambda i: (0, 0)),
            ],
            out_specs=pl.BlockSpec((tb, VOCAB_PAD), lambda i: (i, 0)),
        ),
        compiler_params=pltpu.CompilerParams(
            dimension_semantics=("parallel",)),
    )(ids.astype(jnp.int32), w1f, b1r, w2t, b2r)

    return out[:B] if pad else out


def ngram_reference(ids, emb, w1, b1, w2, b2):
    """Pure-JAX f32 reference matching the PyTorch forward, row per example."""
    embeds = emb[ids].reshape(ids.shape[0], -1)                   # (B, CTX*EMB)
    h = jnp.maximum(embeds @ w1.T + b1, 0.0)                      # (B, HID)
    logits = h @ w2.T + b2                                        # (B, VOCAB)
    return jax.nn.log_softmax(logits, axis=-1)


if __name__ == "__main__":
    key = jax.random.PRNGKey(0)
    k_emb, k_w1, k_b1, k_w2, k_b2, k_idx = jax.random.split(key, 6)

    # Deterministic parameter init (nn.Embedding ~ N(0,1); nn.Linear ~ U(+-1/sqrt(fan_in)))
    emb = jax.random.normal(k_emb, (VOCAB, EMB), jnp.float32)
    lim1 = 1.0 / (CTX * EMB) ** 0.5
    w1 = jax.random.uniform(k_w1, (HID, CTX * EMB), jnp.float32, -lim1, lim1)
    b1 = jax.random.uniform(k_b1, (HID,), jnp.float32, -lim1, lim1)
    lim2 = 1.0 / HID ** 0.5
    w2 = jax.random.uniform(k_w2, (VOCAB, HID), jnp.float32, -lim2, lim2)
    b2 = jax.random.uniform(k_b2, (VOCAB,), jnp.float32, -lim2, lim2)

    # Batch of contexts (each row is an independent forward of the module).
    # B=256 with tb=128 -> grid of 2 parallel steps (both v7x TensorCores busy).
    B = 256
    ids = jax.random.randint(k_idx, (B, CTX), 0, VOCAB, jnp.int32)

    packed = prepack_params(emb, w1, b1, w2, b2)
    jax.block_until_ready(packed)

    log_probs_padded = ngram_forward(ids, packed)
    jax.block_until_ready(log_probs_padded)

    ref = ngram_reference(ids, emb, w1, b1, w2, b2)
    assert log_probs_padded.shape == (B, VOCAB_PAD)
    log_probs = log_probs_padded[:, :VOCAB]   # comparison only, not the hot path
    max_err = float(jnp.max(jnp.abs(log_probs - ref)))
    # bf16 MXU operands -> ~1e-2-scale rounding vs the f32 reference.
    assert jnp.allclose(log_probs, ref, atol=5e-2, rtol=5e-2), (
        "mismatch vs reference: max abs err = %g" % max_err)

    print("KERNEL_OK")
</pallas_src>

<mosaic_0001>
module attributes {stable_mosaic.version = 11 : i64} {
  func.func @ngram_kernel(%arg0: i32, %arg1: memref<128x8xi32, #tpu.memory_space<vmem>>, %arg2: memref<8x64x128xbf16, #tpu.memory_space<vmem>>, %arg3: memref<1x128xf32, #tpu.memory_space<vmem>>, %arg4: memref<128x128xbf16, #tpu.memory_space<vmem>>, %arg5: memref<1x128xf32, #tpu.memory_space<vmem>>, %arg6: memref<128x128xf32, #tpu.memory_space<vmem>>) attributes {dimension_semantics = [#tpu.dimension_semantics<parallel>], iteration_bounds = array<i64: 2>, scalar_prefetch = 0 : i64, scratch_operands = 0 : i64, tpu.core_type = #tpu.core_type<tc>, window_params = [{transform_indices = @transform_0, window_bounds = array<i64: 128, 8>}, {pipeline_mode = #tpu.pipeline_mode<synchronous>, transform_indices = @transform_1, window_bounds = array<i64: 8, 64, 128>}, {pipeline_mode = #tpu.pipeline_mode<synchronous>, transform_indices = @transform_2, window_bounds = array<i64: 1, 128>}, {pipeline_mode = #tpu.pipeline_mode<synchronous>, transform_indices = @transform_3, window_bounds = array<i64: 128, 128>}, {pipeline_mode = #tpu.pipeline_mode<synchronous>, transform_indices = @transform_4, window_bounds = array<i64: 1, 128>}, {transform_indices = @transform_5, window_bounds = array<i64: 128, 128>}]} {
    %c0 = arith.constant 0 : index
    %c0_0 = arith.constant 0 : index
    %0 = vector.load %arg1[%c0, %c0_0] : memref<128x8xi32, #tpu.memory_space<vmem>>, vector<128x8xi32>
    %1 = tpu.iota {dimensions = array<i32: 1>} : vector<128x64xi32>
    %cst = arith.constant 0.000000e+00 : f32
    %2 = vector.broadcast %cst : f32 to vector<128x128xf32>
    %3 = vector.extract_strided_slice %0 {offsets = [0, 0], sizes = [128, 1], strides = [1, 1]} : vector<128x8xi32> to vector<128x1xi32>
    %4 = vector.broadcast %3 : vector<128x1xi32> to vector<128x64xi32>
    %5 = arith.cmpi eq, %1, %4 : vector<128x64xi32>
    %cst_1 = arith.constant 1.000000e+00 : f32
    %cst_2 = arith.constant 0.000000e+00 : f32
    %6 = vector.broadcast %cst_1 : f32 to vector<128x64xf32>
    %7 = vector.broadcast %cst_2 : f32 to vector<128x64xf32>
    %8 = arith.select %5, %6, %7 : vector<128x64xi1>, vector<128x64xf32>
    %9 = arith.truncf %8 : vector<128x64xf32> to vector<128x64xbf16>
    %c0_3 = arith.constant 0 : index
    %c0_4 = arith.constant 0 : index
    %c0_5 = arith.constant 0 : index
    %10 = vector.load %arg2[%c0_3, %c0_4, %c0_5] : memref<8x64x128xbf16, #tpu.memory_space<vmem>>, vector<1x64x128xbf16>
    %11 = vector.shape_cast %10 : vector<1x64x128xbf16> to vector<64x128xbf16>
    %cst_6 = arith.constant dense<0.000000e+00> : vector<128x128xf32>
    %12 = tpu.matmul %9, %11, %cst_6 {dimension_numbers = #tpu.dot_dimension_numbers<[1], [0], [0], [1], [0, 0, 1, 1], [], []>} : vector<128x64xbf16>, vector<64x128xbf16>, vector<128x128xf32> -> vector<128x128xf32>
    %13 = arith.addf %2, %12 : vector<128x128xf32>
    %14 = vector.extract_strided_slice %0 {offsets = [0, 1], sizes = [128, 1], strides = [1, 1]} : vector<128x8xi32> to vector<128x1xi32>
    %15 = vector.broadcast %14 : vector<128x1xi32> to vector<128x64xi32>
    %16 = arith.cmpi eq, %1, %15 : vector<128x64xi32>
    %cst_7 = arith.constant 1.000000e+00 : f32
    %cst_8 = arith.constant 0.000000e+00 : f32
    %17 = vector.broadcast %cst_7 : f32 to vector<128x64xf32>
    %18 = vector.broadcast %cst_8 : f32 to vector<128x64xf32>
    %19 = arith.select %16, %17, %18 : vector<128x64xi1>, vector<128x64xf32>
    %20 = arith.truncf %19 : vector<128x64xf32> to vector<128x64xbf16>
    %c1 = arith.constant 1 : index
    %c0_9 = arith.constant 0 : index
    %c0_10 = arith.constant 0 : index
    %21 = vector.load %arg2[%c1, %c0_9, %c0_10] : memref<8x64x128xbf16, #tpu.memory_space<vmem>>, vector<1x64x128xbf16>
    %22 = vector.shape_cast %21 : vector<1x64x128xbf16> to vector<64x128xbf16>
    %cst_11 = arith.constant dense<0.000000e+00> : vector<128x128xf32>
    %23 = tpu.matmul %20, %22, %cst_11 {dimension_numbers = #tpu.dot_dimension_numbers<[1], [0], [0], [1], [0, 0, 1, 1], [], []>} : vector<128x64xbf16>, vector<64x128xbf16>, vector<128x128xf32> -> vector<128x128xf32>
    %24 = arith.addf %13, %23 : vector<128x128xf32>
    %25 = vector.extract_strided_slice %0 {offsets = [0, 2], sizes = [128, 1], strides = [1, 1]} : vector<128x8xi32> to vector<128x1xi32>
    %26 = vector.broadcast %25 : vector<128x1xi32> to vector<128x64xi32>
    %27 = arith.cmpi eq, %1, %26 : vector<128x64xi32>
    %cst_12 = arith.constant 1.000000e+00 : f32
    %cst_13 = arith.constant 0.000000e+00 : f32
    %28 = vector.broadcast %cst_12 : f32 to vector<128x64xf32>
    %29 = vector.broadcast %cst_13 : f32 to vector<128x64xf32>
    %30 = arith.select %27, %28, %29 : vector<128x64xi1>, vector<128x64xf32>
    %31 = arith.truncf %30 : vector<128x64xf32> to vector<128x64xbf16>
    %c2 = arith.constant 2 : index
    %c0_14 = arith.constant 0 : index
    %c0_15 = arith.constant 0 : index
    %32 = vector.load %arg2[%c2, %c0_14, %c0_15] : memref<8x64x128xbf16, #tpu.memory_space<vmem>>, vector<1x64x128xbf16>
    %33 = vector.shape_cast %32 : vector<1x64x128xbf16> to vector<64x128xbf16>
    %cst_16 = arith.constant dense<0.000000e+00> : vector<128x128xf32>
    %34 = tpu.matmul %31, %33, %cst_16 {dimension_numbers = #tpu.dot_dimension_numbers<[1], [0], [0], [1], [0, 0, 1, 1], [], []>} : vector<128x64xbf16>, vector<64x128xbf16>, vector<128x128xf32> -> vector<128x128xf32>
    %35 = arith.addf %24, %34 : vector<128x128xf32>
    %36 = vector.extract_strided_slice %0 {offsets = [0, 3], sizes = [128, 1], strides = [1, 1]} : vector<128x8xi32> to vector<128x1xi32>
    %37 = vector.broadcast %36 : vector<128x1xi32> to vector<128x64xi32>
    %38 = arith.cmpi eq, %1, %37 : vector<128x64xi32>
    %cst_17 = arith.constant 1.000000e+00 : f32
    %cst_18 = arith.constant 0.000000e+00 : f32
    %39 = vector.broadcast %cst_17 : f32 to vector<128x64xf32>
    %40 = vector.broadcast %cst_18 : f32 to vector<128x64xf32>
    %41 = arith.select %38, %39, %40 : vector<128x64xi1>, vector<128x64xf32>
    %42 = arith.truncf %41 : vector<128x64xf32> to vector<128x64xbf16>
    %c3 = arith.constant 3 : index
    %c0_19 = arith.constant 0 : index
    %c0_20 = arith.constant 0 : index
    %43 = vector.load %arg2[%c3, %c0_19, %c0_20] : memref<8x64x128xbf16, #tpu.memory_space<vmem>>, vector<1x64x128xbf16>
    %44 = vector.shape_cast %43 : vector<1x64x128xbf16> to vector<64x128xbf16>
    %cst_21 = arith.constant dense<0.000000e+00> : vector<128x128xf32>
    %45 = tpu.matmul %42, %44, %cst_21 {dimension_numbers = #tpu.dot_dimension_numbers<[1], [0], [0], [1], [0, 0, 1, 1], [], []>} : vector<128x64xbf16>, vector<64x128xbf16>, vector<128x128xf32> -> vector<128x128xf32>
    %46 = arith.addf %35, %45 : vector<128x128xf32>
    %47 = vector.extract_strided_slice %0 {offsets = [0, 4], sizes = [128, 1], strides = [1, 1]} : vector<128x8xi32> to vector<128x1xi32>
    %48 = vector.broadcast %47 : vector<128x1xi32> to vector<128x64xi32>
    %49 = arith.cmpi eq, %1, %48 : vector<128x64xi32>
    %cst_22 = arith.constant 1.000000e+00 : f32
    %cst_23 = arith.constant 0.000000e+00 : f32
    %50 = vector.broadcast %cst_22 : f32 to vector<128x64xf32>
    %51 = vector.broadcast %cst_23 : f32 to vector<128x64xf32>
    %52 = arith.select %49, %50, %51 : vector<128x64xi1>, vector<128x64xf32>
    %53 = arith.truncf %52 : vector<128x64xf32> to vector<128x64xbf16>
    %c4 = arith.constant 4 : index
    %c0_24 = arith.constant 0 : index
    %c0_25 = arith.constant 0 : index
    %54 = vector.load %arg2[%c4, %c0_24, %c0_25] : memref<8x64x128xbf16, #tpu.memory_space<vmem>>, vector<1x64x128xbf16>
    %55 = vector.shape_cast %54 : vector<1x64x128xbf16> to vector<64x128xbf16>
    %cst_26 = arith.constant dense<0.000000e+00> : vector<128x128xf32>
    %56 = tpu.matmul %53, %55, %cst_26 {dimension_numbers = #tpu.dot_dimension_numbers<[1], [0], [0], [1], [0, 0, 1, 1], [], []>} : vector<128x64xbf16>, vector<64x128xbf16>, vector<128x128xf32> -> vector<128x128xf32>
    %57 = arith.addf %46, %56 : vector<128x128xf32>
    %58 = vector.extract_strided_slice %0 {offsets = [0, 5], sizes = [128, 1], strides = [1, 1]} : vector<128x8xi32> to vector<128x1xi32>
    %59 = vector.broadcast %58 : vector<128x1xi32> to vector<128x64xi32>
    %60 = arith.cmpi eq, %1, %59 : vector<128x64xi32>
    %cst_27 = arith.constant 1.000000e+00 : f32
    %cst_28 = arith.constant 0.000000e+00 : f32
    %61 = vector.broadcast %cst_27 : f32 to vector<128x64xf32>
    %62 = vector.broadcast %cst_28 : f32 to vector<128x64xf32>
    %63 = arith.select %60, %61, %62 : vector<128x64xi1>, vector<128x64xf32>
    %64 = arith.truncf %63 : vector<128x64xf32> to vector<128x64xbf16>
    %c5 = arith.constant 5 : index
    %c0_29 = arith.constant 0 : index
    %c0_30 = arith.constant 0 : index
    %65 = vector.load %arg2[%c5, %c0_29, %c0_30] : memref<8x64x128xbf16, #tpu.memory_space<vmem>>, vector<1x64x128xbf16>
    %66 = vector.shape_cast %65 : vector<1x64x128xbf16> to vector<64x128xbf16>
    %cst_31 = arith.constant dense<0.000000e+00> : vector<128x128xf32>
    %67 = tpu.matmul %64, %66, %cst_31 {dimension_numbers = #tpu.dot_dimension_numbers<[1], [0], [0], [1], [0, 0, 1, 1], [], []>} : vector<128x64xbf16>, vector<64x128xbf16>, vector<128x128xf32> -> vector<128x128xf32>
    %68 = arith.addf %57, %67 : vector<128x128xf32>
    %69 = vector.extract_strided_slice %0 {offsets = [0, 6], sizes = [128, 1], strides = [1, 1]} : vector<128x8xi32> to vector<128x1xi32>
    %70 = vector.broadcast %69 : vector<128x1xi32> to vector<128x64xi32>
    %71 = arith.cmpi eq, %1, %70 : vector<128x64xi32>
    %cst_32 = arith.constant 1.000000e+00 : f32
    %cst_33 = arith.constant 0.000000e+00 : f32
    %72 = vector.broadcast %cst_32 : f32 to vector<128x64xf32>
    %73 = vector.broadcast %cst_33 : f32 to vector<128x64xf32>
    %74 = arith.select %71, %72, %73 : vector<128x64xi1>, vector<128x64xf32>
    %75 = arith.truncf %74 : vector<128x64xf32> to vector<128x64xbf16>
    %c6 = arith.constant 6 : index
    %c0_34 = arith.constant 0 : index
    %c0_35 = arith.constant 0 : index
    %76 = vector.load %arg2[%c6, %c0_34, %c0_35] : memref<8x64x128xbf16, #tpu.memory_space<vmem>>, vector<1x64x128xbf16>
    %77 = vector.shape_cast %76 : vector<1x64x128xbf16> to vector<64x128xbf16>
    %cst_36 = arith.constant dense<0.000000e+00> : vector<128x128xf32>
    %78 = tpu.matmul %75, %77, %cst_36 {dimension_numbers = #tpu.dot_dimension_numbers<[1], [0], [0], [1], [0, 0, 1, 1], [], []>} : vector<128x64xbf16>, vector<64x128xbf16>, vector<128x128xf32> -> vector<128x128xf32>
    %79 = arith.addf %68, %78 : vector<128x128xf32>
    %80 = vector.extract_strided_slice %0 {offsets = [0, 7], sizes = [128, 1], strides = [1, 1]} : vector<128x8xi32> to vector<128x1xi32>
    %81 = vector.broadcast %80 : vector<128x1xi32> to vector<128x64xi32>
    %82 = arith.cmpi eq, %1, %81 : vector<128x64xi32>
    %cst_37 = arith.constant 1.000000e+00 : f32
    %cst_38 = arith.constant 0.000000e+00 : f32
    %83 = vector.broadcast %cst_37 : f32 to vector<128x64xf32>
    %84 = vector.broadcast %cst_38 : f32 to vector<128x64xf32>
    %85 = arith.select %82, %83, %84 : vector<128x64xi1>, vector<128x64xf32>
    %86 = arith.truncf %85 : vector<128x64xf32> to vector<128x64xbf16>
    %c7 = arith.constant 7 : index
    %c0_39 = arith.constant 0 : index
    %c0_40 = arith.constant 0 : index
    %87 = vector.load %arg2[%c7, %c0_39, %c0_40] : memref<8x64x128xbf16, #tpu.memory_space<vmem>>, vector<1x64x128xbf16>
    %88 = vector.shape_cast %87 : vector<1x64x128xbf16> to vector<64x128xbf16>
    %cst_41 = arith.constant dense<0.000000e+00> : vector<128x128xf32>
    %89 = tpu.matmul %86, %88, %cst_41 {dimension_numbers = #tpu.dot_dimension_numbers<[1], [0], [0], [1], [0, 0, 1, 1], [], []>} : vector<128x64xbf16>, vector<64x128xbf16>, vector<128x128xf32> -> vector<128x128xf32>
    %90 = arith.addf %79, %89 : vector<128x128xf32>
    %c0_42 = arith.constant 0 : index
    %c0_43 = arith.constant 0 : index
    %91 = vector.load %arg3[%c0_42, %c0_43] : memref<1x128xf32, #tpu.memory_space<vmem>>, vector<1x128xf32>
    %92 = vector.broadcast %91 : vector<1x128xf32> to vector<128x128xf32>
    %93 = arith.addf %90, %92 : vector<128x128xf32>
    %cst_44 = arith.constant 0.000000e+00 : f32
    %94 = vector.broadcast %cst_44 : f32 to vector<128x128xf32>
    %95 = arith.maximumf %93, %94 : vector<128x128xf32>
    %96 = arith.truncf %95 : vector<128x128xf32> to vector<128x128xbf16>
    %c0_45 = arith.constant 0 : index
    %c0_46 = arith.constant 0 : index
    %97 = vector.load %arg4[%c0_45, %c0_46] : memref<128x128xbf16, #tpu.memory_space<vmem>>, vector<128x128xbf16>
    %cst_47 = arith.constant dense<0.000000e+00> : vector<128x128xf32>
    %98 = tpu.matmul %96, %97, %cst_47 {dimension_numbers = #tpu.dot_dimension_numbers<[1], [0], [0], [1], [0, 0, 1, 1], [], []>} : vector<128x128xbf16>, vector<128x128xbf16>, vector<128x128xf32> -> vector<128x128xf32>
    %c0_48 = arith.constant 0 : index
    %c0_49 = arith.constant 0 : index
    %99 = vector.load %arg5[%c0_48, %c0_49] : memref<1x128xf32, #tpu.memory_space<vmem>>, vector<1x128xf32>
    %100 = vector.broadcast %99 : vector<1x128xf32> to vector<128x128xf32>
    %101 = arith.addf %98, %100 : vector<128x128xf32>
    %cst_50 = arith.constant dense<0xFF800000> : vector<128xf32>
    %102 = vector.multi_reduction <maximumf>, %101, %cst_50 [1] : vector<128x128xf32> to vector<128xf32>
    %103 = vector.shape_cast %102 : vector<128xf32> to vector<128x1xf32>
    %104 = vector.broadcast %103 : vector<128x1xf32> to vector<128x128xf32>
    %105 = arith.subf %101, %104 : vector<128x128xf32>
    %106 = math.exp %105 : vector<128x128xf32>
    %cst_51 = arith.constant dense<0.000000e+00> : vector<128xf32>
    %107 = vector.multi_reduction <add>, %106, %cst_51 [1] : vector<128x128xf32> to vector<128xf32>
    %108 = vector.shape_cast %107 : vector<128xf32> to vector<128x1xf32>
    %109 = math.log %108 : vector<128x1xf32>
    %110 = vector.broadcast %109 : vector<128x1xf32> to vector<128x128xf32>
    %111 = arith.subf %105, %110 : vector<128x128xf32>
    %c0_52 = arith.constant 0 : index
    %c0_53 = arith.constant 0 : index
    %112 = vector.load %arg6[%c0_52, %c0_53] : memref<128x128xf32, #tpu.memory_space<vmem>>, vector<128x128xf32>
    tpu.vector_store %arg6[%c0_52, %c0_53], %111 {strides = array<i32>} : memref<128x128xf32, #tpu.memory_space<vmem>>, vector<128x128xf32>,
    return
  }
  func.func @transform_0(%arg0: i32) -> (i32, i32) {
    %c0_i32 = arith.constant 0 : i32
    %c0_i32_0 = arith.constant 0 : i32
    return %arg0, %c0_i32 : i32, i32
  }
  func.func @transform_1(%arg0: i32) -> (i32, i32, i32) {
    %c0_i32 = arith.constant 0 : i32
    %c0_i32_0 = arith.constant 0 : i32
    %c0_i32_1 = arith.constant 0 : i32
    %c0_i32_2 = arith.constant 0 : i32
    return %c0_i32, %c0_i32_0, %c0_i32_1 : i32, i32, i32
  }
  func.func @transform_2(%arg0: i32) -> (i32, i32) {
    %c0_i32 = arith.constant 0 : i32
    %c0_i32_0 = arith.constant 0 : i32
    %c0_i32_1 = arith.constant 0 : i32
    return %c0_i32, %c0_i32_0 : i32, i32
  }
  func.func @transform_3(%arg0: i32) -> (i32, i32) {
    %c0_i32 = arith.constant 0 : i32
    %c0_i32_0 = arith.constant 0 : i32
    %c0_i32_1 = arith.constant 0 : i32
    return %c0_i32, %c0_i32_0 : i32, i32
  }
  func.func @transform_4(%arg0: i32) -> (i32, i32) {
    %c0_i32 = arith.constant 0 : i32
    %c0_i32_0 = arith.constant 0 : i32
    %c0_i32_1 = arith.constant 0 : i32
    return %c0_i32, %c0_i32_0 : i32, i32
  }
  func.func @transform_5(%arg0: i32) -> (i32, i32) {
    %c0_i32 = arith.constant 0 : i32
    %c0_i32_0 = arith.constant 0 : i32
    return %arg0, %c0_i32 : i32, i32
  }
}

</mosaic_0001>

<llo_original>
// kernel: tpu_custom_call.1
$region0: #{tpu_custom_call.1}
  #allocation0 [shape = 'u32[]', space=smem, size = 0x4, offset = 0x4, fixed_abs, tag = 'smem constant byte address 0x4 - core index']
  #allocation1 [shape = 'u32[144,128]{1,0:T(1,128)}', space=vmem, size = 0x12000, scoped, tag = 'internal scratch']
  %s0 = inlined_call_operand.vmem [shape: s32[256,8], index: 0, kind: input, shape index: {}]
  %s1 = inlined_call_operand.vmem [shape: bf16[8,64,128], index: 1, kind: input, shape index: {}]
  %s2 = inlined_call_operand.vmem [shape: f32[1,128], index: 2, kind: input, shape index: {}]
  %s3 = inlined_call_operand.hbm [shape: bf16[128,128], index: 3, kind: input, shape index: {}]
  %s4 = inlined_call_operand.vmem [shape: f32[1,128], index: 4, kind: input, shape index: {}]
  %s5 = inlined_call_operand.hbm [shape: f32[256,128], index: 5, kind: output, shape index: {}]
  %s6 = sld [smem:[#allocation0]]
  $region57: #{tpu_custom_call.1} parent=0
    _
  %s8 = ssub.s32 1, %s6
  %s9 = scalar_select 0, %s8, %s6
  $region1: #{tpu_custom_call.1} parent=0
    #allocation2 [shape = 'u8[32768]{0}', space=vmem, size = 0x8000, scoped, tag = 'input window, operand 3, single buffered']
    #allocation3 [shape = 's32[2]{0}', space=sflag, size = 0x8, scoped, tag = 'scoped memory for tpu_custom_call.1']
    #allocation4 [shape = 's32[2]{0}', space=sflag, size = 0x8, scoped, tag = 'scoped memory for tpu_custom_call.1']
    #allocation5 [shape = 'u8[131072]{0}', space=vmem, size = 0x20000, scoped, tag = 'output window, operand 0']
    %10 = vsyncpa [#allocation3], 0
    %11 = vsyncpa [#allocation4], 0
    %s12 = scalar_lea.sflag [#allocation4], 1
    %13 = vsyncpa %s12, 0
    loop: start=0, step=1, limit=4
    $region2: #{tpu_custom_call.1} parent=1 // loop_pre_header
      _
    $region3: #{tpu_custom_call.1} parent=1 // loop_header
      %s15 = sphi 0, %s19
      %p16 = scmp.ge.s32.totalorder %s15, 4
      %s25 = sphi 0, %s27
      %s28 = sphi 0, %s25
      %s29 = sphi 0, %s28
      %s45 = sphi 0, %s29
      %s49 = sphi 0, %s49
      %s51 = sphi 0, %s49
      %s52 = sphi 0, %s51
      %s66 = sphi 0, %s52
      %s70 = sphi 0, %s70
      %s72 = sphi 0, %s70
      %s73 = sphi 0, %s72
      %s87 = sphi 0, %s73
      %s91 = sphi 0, %s91
      %s93 = sphi 0, %s91
      %s94 = sphi 0, %s93
      %s108 = sphi 0, %s94
      %s112 = sphi 0, %s112
      %s114 = sphi 0, %s112
      %s115 = sphi 0, %s114
      %s129 = sphi 0, %s115
      %s135 = sphi 0, %s137
      %s138 = sphi 0, %s135
      %s139 = sphi 0, %s138
      %s155 = sphi 0, %s139
    $region4: #{tpu_custom_call.1} parent=1 // loop_header_branch
      %18 = sbr.rel (%p16) target = $region8
    $region5: #{tpu_custom_call.1} parent=1 // loop_body
      %s20 = ssub.s32 %s15, 1
      %s21 = ssub.s32 %s15, 2
      %s22 = sadd.s32 %s15, 1
      %s23 = ssub.s32 %s15, %s22
      %p24 = scmp.eq.s32.totalorder %s23, 0
      %s26 = sadd.s32 %s25, 1
      %s27 = scalar_select %p24, %s25, %s26
      %p30 = pneg %p24
      %p31 = scmp.eq.s32.totalorder %s15, 1
      %p32 = por %p30, %p31
      %p33 = scmp.ne.s32.totalorder %s25, %s28
      %p34 = scmp.eq.s32.totalorder %s15, 0
      %p35 = por %p33, %p34
      %p36 = scmp.ne.s32.totalorder %s25, %s28
      %p37 = scmp.eq.s32.totalorder %s20, 1
      %p38 = por %p36, %p37
      %p39 = scmp.ne.s32.totalorder %s28, %s29
      %p40 = scmp.eq.s32.totalorder %s20, 0
      %p41 = por %p39, %p40
      %p42 = scmp.ne.s32.totalorder %s28, %s29
      %p43 = scmp.eq.s32.totalorder %s21, 1
      %p44 = por %p42, %p43
      %p46 = scmp.ne.s32.totalorder %s29, %s45
      %p47 = scmp.eq.s32.totalorder %s21, 0
      %p48 = por %p46, %p47
      %s50 = sadd.s32 %s49, 1
      %p53 = scmp.eq.s32.totalorder %s15, 1
      %p54 = scmp.ne.s32.totalorder %s49, %s51
      %p55 = scmp.eq.s32.totalorder %s15, 0
      %p56 = por %p54, %p55
      %p57 = scmp.ne.s32.totalorder %s49, %s51
      %p58 = scmp.eq.s32.totalorder %s20, 1
      %p59 = por %p57, %p58
      %p60 = scmp.ne.s32.totalorder %s51, %s52
      %p61 = scmp.eq.s32.totalorder %s20, 0
      %p62 = por %p60, %p61
      %p63 = scmp.ne.s32.totalorder %s51, %s52
      %p64 = scmp.eq.s32.totalorder %s21, 1
      %p65 = por %p63, %p64
      %p67 = scmp.ne.s32.totalorder %s52, %s66
      %p68 = scmp.eq.s32.totalorder %s21, 0
      %p69 = por %p67, %p68
      %s71 = sadd.s32 %s70, 1
      %p74 = scmp.eq.s32.totalorder %s15, 1
      %p75 = scmp.ne.s32.totalorder %s70, %s72
      %p76 = scmp.eq.s32.totalorder %s15, 0
      %p77 = por %p75, %p76
      %p78 = scmp.ne.s32.totalorder %s70, %s72
      %p79 = scmp.eq.s32.totalorder %s20, 1
      %p80 = por %p78, %p79
      %p81 = scmp.ne.s32.totalorder %s72, %s73
      %p82 = scmp.eq.s32.totalorder %s20, 0
      %p83 = por %p81, %p82
      %p84 = scmp.ne.s32.totalorder %s72, %s73
      %p85 = scmp.eq.s32.totalorder %s21, 1
      %p86 = por %p84, %p85
      %p88 = scmp.ne.s32.totalorder %s73, %s87
      %p89 = scmp.eq.s32.totalorder %s21, 0
      %p90 = por %p88, %p89
      %s92 = sadd.s32 %s91, 1
      %p95 = scmp.eq.s32.totalorder %s15, 1
      %p96 = scmp.ne.s32.totalorder %s91, %s93
      %p97 = scmp.eq.s32.totalorder %s15, 0
      %p98 = por %p96, %p97
      %p99 = scmp.ne.s32.totalorder %s91, %s93
      %p100 = scmp.eq.s32.totalorder %s20, 1
      %p101 = por %p99, %p100
      %p102 = scmp.ne.s32.totalorder %s93, %s94
      %p103 = scmp.eq.s32.totalorder %s20, 0
      %p104 = por %p102, %p103
      %p105 = scmp.ne.s32.totalorder %s93, %s94
      %p106 = scmp.eq.s32.totalorder %s21, 1
      %p107 = por %p105, %p106
      %p109 = scmp.ne.s32.totalorder %s94, %s108
      %p110 = scmp.eq.s32.totalorder %s21, 0
      %p111 = por %p109, %p110
      %s113 = sadd.s32 %s112, 1
      %p116 = scmp.eq.s32.totalorder %s15, 1
      %p117 = scmp.ne.s32.totalorder %s112, %s114
      %p118 = scmp.eq.s32.totalorder %s15, 0
      %p119 = por %p117, %p118
      %p120 = scmp.ne.s32.totalorder %s112, %s114
      %p121 = scmp.eq.s32.totalorder %s20, 1
      %p122 = por %p120, %p121
      %p123 = scmp.ne.s32.totalorder %s114, %s115
      %p124 = scmp.eq.s32.totalorder %s20, 0
      %p125 = por %p123, %p124
      %p126 = scmp.ne.s32.totalorder %s114, %s115
      %p127 = scmp.eq.s32.totalorder %s21, 1
      %p128 = por %p126, %p127
      %p130 = scmp.ne.s32.totalorder %s115, %s129
      %p131 = scmp.eq.s32.totalorder %s21, 0
      %p132 = por %p130, %p131
      %s133 = ssub.s32 %s15, %s22
      %p134 = scmp.eq.s32.totalorder %s133, 0
      %s136 = sadd.s32 %s135, 1
      %s137 = scalar_select %p134, %s135, %s136
      %p140 = pneg %p134
      %p141 = scmp.eq.s32.totalorder %s15, 1
      %p142 = por %p140, %p141
      %p143 = scmp.ne.s32.totalorder %s135, %s138
      %p144 = scmp.eq.s32.totalorder %s15, 0
      %p145 = por %p143, %p144
      %p146 = scmp.ne.s32.totalorder %s135, %s138
      %p147 = scmp.eq.s32.totalorder %s20, 1
      %p148 = por %p146, %p147
      %p149 = scmp.ne.s32.totalorder %s138, %s139
      %p150 = scmp.eq.s32.totalorder %s20, 0
      %p151 = por %p149, %p150
      %p152 = scmp.ne.s32.totalorder %s138, %s139
      %p153 = scmp.eq.s32.totalorder %s21, 1
      %p154 = por %p152, %p153
      %p156 = scmp.ne.s32.totalorder %s139, %s155
      %p157 = scmp.eq.s32.totalorder %s21, 0
      %p158 = por %p156, %p157
      %p159 = scmp.le.s32.totalorder 1, %s15
      %p160 = scmp.lt.s32.totalorder %s15, 3
      %p161 = pnand %p159, %p160
      %p162 = pneg %p161
      // Predicated region
      $region9: #{tpu_custom_call.1} parent=5 // pred_check
        _
      $region10: #{tpu_custom_call.1} parent=5 // pred_check_branch
        %164 = sbr.rel (%p161) target = $region12
      $region11: #{tpu_custom_call.1} parent=5 // pred_region
        %s165 = ssub.s32 %s15, 1
        // Predicated region
        $region13: #{tpu_custom_call.1} parent=11 // pred_check
          %p166 = pneg %p62
        $region14: #{tpu_custom_call.1} parent=11 // pred_check_branch
          %168 = sbr.rel (%p166) target = $region16
        $region15: #{tpu_custom_call.1} parent=11 // pred_region
          _
        $region16: #{tpu_custom_call.1} parent=11 // pred_fallthru
          _
        // Predicated region
        $region17: #{tpu_custom_call.1} parent=11 // pred_check
          %p169 = pneg %p83
        $region18: #{tpu_custom_call.1} parent=11 // pred_check_branch
          %171 = sbr.rel (%p169) target = $region20
        $region19: #{tpu_custom_call.1} parent=11 // pred_region
          _
        $region20: #{tpu_custom_call.1} parent=11 // pred_fallthru
          _
        // Predicated region
        $region21: #{tpu_custom_call.1} parent=11 // pred_check
          %p172 = pneg %p104
        $region22: #{tpu_custom_call.1} parent=11 // pred_check_branch
          %174 = sbr.rel (%p172) target = $region24
        $region23: #{tpu_custom_call.1} parent=11 // pred_region
          %s176 = ssub.s32 1024, 1024
          %177 = vsyncadd [#allocation3], %s176
          %s178 = sshll.u32 [#allocation2], 4
          %s179 = int_to_ptr.vmem [resolvable:$true] %s178
          %184 = dma.hbm_to_vmem [thread:$0]  %s3, 1024, %s179, [#allocation3], 64, 64, 4
        $region24: #{tpu_custom_call.1} parent=11 // pred_fallthru
          _
        // Predicated region
        $region25: #{tpu_custom_call.1} parent=11 // pred_check
          %p185 = pneg %p125
        $region26: #{tpu_custom_call.1} parent=11 // pred_check_branch
          %187 = sbr.rel (%p185) target = $region28
        $region27: #{tpu_custom_call.1} parent=11 // pred_region
          _
        $region28: #{tpu_custom_call.1} parent=11 // pred_fallthru
          _
      $region12: #{tpu_custom_call.1} parent=5 // pred_fallthru
        _
      %p188 = scmp.lt.s32.totalorder %s15, 2
      // Predicated region
      $region29: #{tpu_custom_call.1} parent=5 // pred_check
        %p189 = pneg %p188
      $region30: #{tpu_custom_call.1} parent=5 // pred_check_branch
        %191 = sbr.rel (%p189) target = $region32
      $region31: #{tpu_custom_call.1} parent=5 // pred_region
        // Predicated region
        $region33: #{tpu_custom_call.1} parent=31 // pred_check
          %p192 = pneg %p35
        $region34: #{tpu_custom_call.1} parent=31 // pred_check_branch
          %194 = sbr.rel (%p192) target = $region36
        $region35: #{tpu_custom_call.1} parent=31 // pred_region
          %s195 = smul.u32 16, %s15
          %p196 = scmp.lt.s32.totalorder %s195, 31
          %s197 = scalar_select %p196, %s195, 31
          %s198 = smul.addr %s197, 8
          %s199 = scalar_lea.vmem %s0, %s198
          %s200 = smul.u32 16, %s15
        $region36: #{tpu_custom_call.1} parent=31 // pred_fallthru
          _
      $region32: #{tpu_custom_call.1} parent=5 // pred_fallthru
        _
      %p201 = scmp.le.s32.totalorder 1, %s15
      %p202 = scmp.lt.s32.totalorder %s15, 3
      %p203 = pnand %p201, %p202
      %p204 = pneg %p203
      // Predicated region
      $region37: #{tpu_custom_call.1} parent=5 // pred_check
        _
      $region38: #{tpu_custom_call.1} parent=5 // pred_check_branch
        %206 = sbr.rel (%p203) target = $region40
      $region39: #{tpu_custom_call.1} parent=5 // pred_region
        %s207 = ssub.s32 %s15, 1
        // Predicated region
        $region41: #{tpu_custom_call.1} parent=39 // pred_check
          %p208 = pneg %p104
        $region42: #{tpu_custom_call.1} parent=39 // pred_check_branch
          %210 = sbr.rel (%p208) target = $region44
        $region43: #{tpu_custom_call.1} parent=39 // pred_region
          %211 = dma.done [#allocation3], 1024
        $region44: #{tpu_custom_call.1} parent=39 // pred_fallthru
          _
        %s212 = smul.u32 16, %s20
        %p213 = scmp.lt.s32.totalorder %s212, 31
        %s214 = scalar_select %p213, %s212, 31
        %s215 = smul.addr %s214, 8
        %s216 = scalar_lea.vmem %s0, %s215
        %p217 = pneg %p41
        %p218 = pneg %p38
        %p219 = pneg %p62
        %p220 = pneg %p59
        %p221 = pneg %p83
        %p222 = pneg %p80
        %p223 = pneg %p104
        %p224 = pneg %p101
        %p225 = pneg %p125
        %p226 = pneg %p122
        %p227 = pneg %p151
        %p228 = pneg %p148
        %s229 = sand.u32 %s138, 1
        %s230 = scalar_lea.sflag [#allocation4], %s229
        %s231 = sand.u32 %s138, 1
        %s232 = smul.addr %s231, 128
        %s233 = scalar_lea.vmem [#allocation5], %s232
        %s234 = smul.u32 16, %s20
        %p235 = scmp.lt.s32.totalorder %s234, 31
        %s236 = scalar_select %p235, %s234, 31
        %s237 = smul.addr %s236, 8
        %s238 = scalar_lea.vmem %s0, %s237
        %s239 = smul.u32 16, %s20
        %s240 = smul.u32 16, %s20
        %v242 = vld [vmem:[%s238] sm:$0xff]
        %v243 = vld [vmem:[%s238 + $0x8] sm:$0xff]
        %v244 = vld [vmem:[%s238 + $0x10] sm:$0xff]
        %v245 = vld [vmem:[%s238 + $0x18] sm:$0xff]
        %v246 = vld [vmem:[%s238 + $0x20] sm:$0xff]
        %v247 = vld [vmem:[%s238 + $0x28] sm:$0xff]
        %v248 = vld [vmem:[%s238 + $0x30] sm:$0xff]
        %v249 = vld [vmem:[%s238 + $0x38] sm:$0xff]
        %v250 = vld [vmem:[%s238 + $0x40] sm:$0xff]
        %v251 = vld [vmem:[%s238 + $0x48] sm:$0xff]
        %v252 = vld [vmem:[%s238 + $0x50] sm:$0xff]
        %v253 = vld [vmem:[%s238 + $0x58] sm:$0xff]
        %v254 = vld [vmem:[%s238 + $0x60] sm:$0xff]
        %v255 = vld [vmem:[%s238 + $0x68] sm:$0xff]
        %v256 = vld [vmem:[%s238 + $0x70] sm:$0xff]
        %v257 = vld [vmem:[%s238 + $0x78] sm:$0xff]
        %v258 = vlaneseq
        %v259 = vand.u32 %v258, 127
        %260 = vset.pattern.permute.xlu0 0
        %261 = vperm.xlu0 %260, %v242
        %v262 = vpop.permute.xlu0 %261
        %263 = vset.pattern.permute.xlu0 0
        %264 = vperm.xlu0 %263, %v243
        %v265 = vpop.permute.xlu0 %264
        %266 = vset.pattern.permute.xlu0 0
        %267 = vperm.xlu0 %266, %v244
        %v268 = vpop.permute.xlu0 %267
        %269 = vset.pattern.permute.xlu0 0
        %270 = vperm.xlu0 %269, %v245
        %v271 = vpop.permute.xlu0 %270
        %272 = vset.pattern.permute.xlu0 0
        %273 = vperm.xlu0 %272, %v246
        %v274 = vpop.permute.xlu0 %273
        %275 = vset.pattern.permute.xlu0 0
        %276 = vperm.xlu0 %275, %v247
        %v277 = vpop.permute.xlu0 %276
        %278 = vset.pattern.permute.xlu0 0
        %279 = vperm.xlu0 %278, %v248
        %v280 = vpop.permute.xlu0 %279
        %281 = vset.pattern.permute.xlu0 0
        %282 = vperm.xlu0 %281, %v249
        %v283 = vpop.permute.xlu0 %282
        %284 = vset.pattern.permute.xlu0 0
        %285 = vperm.xlu0 %284, %v250
        %v286 = vpop.permute.xlu0 %285
        %287 = vset.pattern.permute.xlu0 0
        %288 = vperm.xlu0 %287, %v251
        %v289 = vpop.permute.xlu0 %288
        %290 = vset.pattern.permute.xlu0 0
        %291 = vperm.xlu0 %290, %v252
        %v292 = vpop.permute.xlu0 %291
        %293 = vset.pattern.permute.xlu0 0
        %294 = vperm.xlu0 %293, %v253
        %v295 = vpop.permute.xlu0 %294
        %296 = vset.pattern.permute.xlu0 0
        %297 = vperm.xlu0 %296, %v254
        %v298 = vpop.permute.xlu0 %297
        %299 = vset.pattern.permute.xlu0 0
        %300 = vperm.xlu0 %299, %v255
        %v301 = vpop.permute.xlu0 %300
        %302 = vset.pattern.permute.xlu0 0
        %303 = vperm.xlu0 %302, %v256
        %v304 = vpop.permute.xlu0 %303
        %305 = vset.pattern.permute.xlu0 0
        %306 = vperm.xlu0 %305, %v257
        %v307 = vpop.permute.xlu0 %306
        %vm308 = vcmp.eq.s32.totalorder %v259, %v262
        %vm309 = vcmp.eq.s32.totalorder %v259, %v265
        %vm310 = vcmp.eq.s32.totalorder %v259, %v268
        %vm311 = vcmp.eq.s32.totalorder %v259, %v271
        %vm312 = vcmp.eq.s32.totalorder %v259, %v274
        %vm313 = vcmp.eq.s32.totalorder %v259, %v277
        %vm314 = vcmp.eq.s32.totalorder %v259, %v280
        %vm315 = vcmp.eq.s32.totalorder %v259, %v283
        %vm316 = vcmp.eq.s32.totalorder %v259, %v286
        %vm317 = vcmp.eq.s32.totalorder %v259, %v289
        %vm318 = vcmp.eq.s32.totalorder %v259, %v292
        %vm319 = vcmp.eq.s32.totalorder %v259, %v295
        %vm320 = vcmp.eq.s32.totalorder %v259, %v298
        %vm321 = vcmp.eq.s32.totalorder %v259, %v301
        %vm322 = vcmp.eq.s32.totalorder %v259, %v304
        %vm323 = vcmp.eq.s32.totalorder %v259, %v307
        %v324 = vsel %vm308, 1.0, 0.0
        %v325 = vsel %vm309, 1.0, 0.0
        %v326 = vsel %vm310, 1.0, 0.0
        %v327 = vsel %vm311, 1.0, 0.0
        %v328 = vsel %vm312, 1.0, 0.0
        %v329 = vsel %vm313, 1.0, 0.0
        %v330 = vsel %vm314, 1.0, 0.0
        %v331 = vsel %vm315, 1.0, 0.0
        %v332 = vsel %vm316, 1.0, 0.0
        %v333 = vsel %vm317, 1.0, 0.0
        %v334 = vsel %vm318, 1.0, 0.0
        %v335 = vsel %vm319, 1.0, 0.0
        %v336 = vsel %vm320, 1.0, 0.0
        %v337 = vsel %vm321, 1.0, 0.0
        %v338 = vsel %vm322, 1.0, 0.0
        %v339 = vsel %vm323, 1.0, 0.0
        %v340 = vpack.c.bf16 %v325, %v324
        %v341 = vpack.c.bf16 %v327, %v326
        %v342 = vpack.c.bf16 %v329, %v328
        %v343 = vpack.c.bf16 %v331, %v330
        %v344 = vpack.c.bf16 %v333, %v332
        %v345 = vpack.c.bf16 %v335, %v334
        %v346 = vpack.c.bf16 %v337, %v336
        %v347 = vpack.c.bf16 %v339, %v338
        %v348 = vld [vmem:[%s1] sm:$0xf]
        %v349 = vld [vmem:[%s1 + $0x4] sm:$0xf]
        %v350 = vld [vmem:[%s1 + $0x8] sm:$0xf]
        %v351 = vld [vmem:[%s1 + $0xc] sm:$0xf]
        %v352 = vld [vmem:[%s1 + $0x10] sm:$0xf]
        %v353 = vld [vmem:[%s1 + $0x14] sm:$0xf]
        %v354 = vld [vmem:[%s1 + $0x18] sm:$0xf]
        %v355 = vld [vmem:[%s1 + $0x1c] sm:$0xf]
        %356 = vset.pattern.permute.xlu0 1
        %357 = vperm.xlu0 %356, %v242
        %v358 = vpop.permute.xlu0 %357
        %359 = vset.pattern.permute.xlu0 1
        %360 = vperm.xlu0 %359, %v243
        %v361 = vpop.permute.xlu0 %360
        %362 = vset.pattern.permute.xlu0 1
        %363 = vperm.xlu0 %362, %v244
        %v364 = vpop.permute.xlu0 %363
        %365 = vset.pattern.permute.xlu0 1
        %366 = vperm.xlu0 %365, %v245
        %v367 = vpop.permute.xlu0 %366
        %368 = vset.pattern.permute.xlu0 1
        %369 = vperm.xlu0 %368, %v246
        %v370 = vpop.permute.xlu0 %369
        %371 = vset.pattern.permute.xlu0 1
        %372 = vperm.xlu0 %371, %v247
        %v373 = vpop.permute.xlu0 %372
        %374 = vset.pattern.permute.xlu0 1
        %375 = vperm.xlu0 %374, %v248
        %v376 = vpop.permute.xlu0 %375
        %377 = vset.pattern.permute.xlu0 1
        %378 = vperm.xlu0 %377, %v249
        %v379 = vpop.permute.xlu0 %378
        %380 = vset.pattern.permute.xlu0 1
        %381 = vperm.xlu0 %380, %v250
        %v382 = vpop.permute.xlu0 %381
        %383 = vset.pattern.permute.xlu0 1
        %384 = vperm.xlu0 %383, %v251
        %v385 = vpop.permute.xlu0 %384
        %386 = vset.pattern.permute.xlu0 1
        %387 = vperm.xlu0 %386, %v252
        %v388 = vpop.permute.xlu0 %387
        %389 = vset.pattern.permute.xlu0 1
        %390 = vperm.xlu0 %389, %v253
        %v391 = vpop.permute.xlu0 %390
        %392 = vset.pattern.permute.xlu0 1
        %393 = vperm.xlu0 %392, %v254
        %v394 = vpop.permute.xlu0 %393
        %395 = vset.pattern.permute.xlu0 1
        %396 = vperm.xlu0 %395, %v255
        %v397 = vpop.permute.xlu0 %396
        %398 = vset.pattern.permute.xlu0 1
        %399 = vperm.xlu0 %398, %v256
        %v400 = vpop.permute.xlu0 %399
        %401 = vset.pattern.permute.xlu0 1
        %402 = vperm.xlu0 %401, %v257
        %v403 = vpop.permute.xlu0 %402
        %vm404 = vcmp.eq.s32.totalorder %v259, %v358
        %vm405 = vcmp.eq.s32.totalorder %v259, %v361
        %vm406 = vcmp.eq.s32.totalorder %v259, %v364
        %vm407 = vcmp.eq.s32.totalorder %v259, %v367
        %vm408 = vcmp.eq.s32.totalorder %v259, %v370
        %vm409 = vcmp.eq.s32.totalorder %v259, %v373
        %vm410 = vcmp.eq.s32.totalorder %v259, %v376
        %vm411 = vcmp.eq.s32.totalorder %v259, %v379
        %vm412 = vcmp.eq.s32.totalorder %v259, %v382
        %vm413 = vcmp.eq.s32.totalorder %v259, %v385
        %vm414 = vcmp.eq.s32.totalorder %v259, %v388
        %vm415 = vcmp.eq.s32.totalorder %v259, %v391
        %vm416 = vcmp.eq.s32.totalorder %v259, %v394
        %vm417 = vcmp.eq.s32.totalorder %v259, %v397
        %vm418 = vcmp.eq.s32.totalorder %v259, %v400
        %vm419 = vcmp.eq.s32.totalorder %v259, %v403
        %v420 = vsel %vm404, 1.0, 0.0
        %v421 = vsel %vm405, 1.0, 0.0
        %v422 = vsel %vm406, 1.0, 0.0
        %v423 = vsel %vm407, 1.0, 0.0
        %v424 = vsel %vm408, 1.0, 0.0
        %v425 = vsel %vm409, 1.0, 0.0
        %v426 = vsel %vm410, 1.0, 0.0
        %v427 = vsel %vm411, 1.0, 0.0
        %v428 = vsel %vm412, 1.0, 0.0
        %v429 = vsel %vm413, 1.0, 0.0
        %v430 = vsel %vm414, 1.0, 0.0
        %v431 = vsel %vm415, 1.0, 0.0
        %v432 = vsel %vm416, 1.0, 0.0
        %v433 = vsel %vm417, 1.0, 0.0
        %v434 = vsel %vm418, 1.0, 0.0
        %v435 = vsel %vm419, 1.0, 0.0
        %v436 = vpack.c.bf16 %v421, %v420
        %v437 = vpack.c.bf16 %v423, %v422
        %v438 = vpack.c.bf16 %v425, %v424
        %v439 = vpack.c.bf16 %v427, %v426
        %v440 = vpack.c.bf16 %v429, %v428
        %v441 = vpack.c.bf16 %v431, %v430
        %v442 = vpack.c.bf16 %v433, %v432
        %v443 = vpack.c.bf16 %v435, %v434
        %s444 = scalar_lea.vmem %s1, 32
        %v445 = vld [vmem:[%s444] sm:$0xf]
        %v446 = vld [vmem:[%s444 + $0x4] sm:$0xf]
        %v447 = vld [vmem:[%s444 + $0x8] sm:$0xf]
        %v448 = vld [vmem:[%s444 + $0xc] sm:$0xf]
        %v449 = vld [vmem:[%s444 + $0x10] sm:$0xf]
        %v450 = vld [vmem:[%s444 + $0x14] sm:$0xf]
        %v451 = vld [vmem:[%s444 + $0x18] sm:$0xf]
        %v452 = vld [vmem:[%s444 + $0x1c] sm:$0xf]
        %v461 = vunpack.c.l.b16 %v445
        %v462 = vunpack.c.l.b16 %v446
        %v463 = vunpack.c.l.b16 %v447
        %v464 = vunpack.c.l.b16 %v448
        %v465 = vunpack.c.l.b16 %v449
        %v466 = vunpack.c.l.b16 %v450
        %v467 = vunpack.c.l.b16 %v451
        %v468 = vunpack.c.l.b16 %v452
        %v469 = vpack.c.b16 %v462, %v461
        %v470 = vpack.c.b16 %v464, %v463
        %v471 = vpack.c.b16 %v466, %v465
        %v472 = vpack.c.b16 %v468, %v467
        %vm477 = vcmask 523264
        %v479 = vsel %vm477, %v436, 0
        %v482 = vsel %vm477, %v437, 0
        %v485 = vsel %vm477, %v438, 0
        %v488 = vsel %vm477, %v439, 0
        %v491 = vsel %vm477, %v440, 0
        %v494 = vsel %vm477, %v441, 0
        %v497 = vsel %vm477, %v442, 0
        %v500 = vsel %vm477, %v443, 0
        %502 = vmatprep.subr.bf16.mxu0 0
        %503 = vmatpush1.bf16.msra.mxu0 0
        %504 = vmatprep.subr.bf16.mxu0 0
        %505 = vmatpush1.bf16.msra.mxu0 0
        %506 = vmatprep.subr.bf16.mxu0 0
        %507 = vmatpush1.bf16.msra.mxu0 0
        %508 = vmatprep.subr.bf16.mxu0 0
        %509 = vmatpush1.bf16.msra.mxu0 0
        %510 = vmatprep.subr.bf16.mxu0 0
        %511 = vmatpush1.bf16.msra.mxu0 %v472
        %512 = vmatprep.subr.bf16.mxu0 0
        %513 = vmatpush1.bf16.msra.mxu0 %v471
        %514 = vmatprep.subr.bf16.mxu0 0
        %515 = vmatpush1.bf16.msra.mxu0 %v470
        %516 = vmatprep.subr.bf16.mxu0 0
        %517 = vmatpush1.bf16.msra.mxu0 %v469
        %518 = vmatprep.subr.bf16.mxu0 0
        %519 = vmatpush2.bf16.msra.mxu0 0
        %520 = vmatprep.subr.bf16.mxu0 0
        %521 = vmatpush2.bf16.msra.mxu0 0
        %522 = vmatprep.subr.bf16.mxu0 0
        %523 = vmatpush2.bf16.msra.mxu0 0
        %524 = vmatprep.subr.bf16.mxu0 0
        %525 = vmatpush2.bf16.msra.mxu0 0
        %526 = vmatprep.subr.bf16.mxu0 0
        %527 = vmatpush2.bf16.msra.mxu0 0
        %528 = vmatprep.subr.bf16.mxu0 0
        %529 = vmatpush2.bf16.msra.mxu0 0
        %530 = vmatprep.subr.bf16.mxu0 0
        %531 = vmatpush2.bf16.msra.mxu0 0
        %532 = vmatprep.subr.bf16.mxu0 0
        %533 = vmatpush2.bf16.msra.mxu0 0
        %534 = vmatprep.mubr.bf16.mxu0 0
        %535 = vmatmul.mubr.bf16.gmra.mxu0 %v479
        %v536 = vpop.f32.mrf.mxu0
        %v537 = vadd.f32 0.0, %v536
        %v538 = vpop.f32.mrf.mxu0
        %v539 = vpop.f32.mrf.mxu0
        %v540 = vadd.f32 0.0, %v539
        %v541 = vpop.f32.mrf.mxu0
        %542 = vmatprep.mubr.bf16.mxu0 0
        %543 = vmatmul.mubr.bf16.gmra.mxu0 %v482
        %v544 = vpop.f32.mrf.mxu0
        %v545 = vadd.f32 0.0, %v544
        %v546 = vpop.f32.mrf.mxu0
        %v547 = vpop.f32.mrf.mxu0
        %v548 = vadd.f32 0.0, %v547
        %v549 = vpop.f32.mrf.mxu0
        %550 = vmatprep.mubr.bf16.mxu0 0
        %551 = vmatmul.mubr.bf16.gmra.mxu0 %v485
        %v552 = vpop.f32.mrf.mxu0
        %v553 = vadd.f32 0.0, %v552
        %v554 = vpop.f32.mrf.mxu0
        %v555 = vpop.f32.mrf.mxu0
        %v556 = vadd.f32 0.0, %v555
        %v557 = vpop.f32.mrf.mxu0
        %558 = vmatprep.mubr.bf16.mxu0 0
        %559 = vmatmul.mubr.bf16.gmra.mxu0 %v488
        %v560 = vpop.f32.mrf.mxu0
        %v561 = vadd.f32 0.0, %v560
        %v562 = vpop.f32.mrf.mxu0
        %v563 = vpop.f32.mrf.mxu0
        %v564 = vadd.f32 0.0, %v563
        %v565 = vpop.f32.mrf.mxu0
        %566 = vmatprep.mubr.bf16.mxu0 0
        %567 = vmatmul.mubr.bf16.gmra.mxu0 %v491
        %v568 = vpop.f32.mrf.mxu0
        %v569 = vadd.f32 0.0, %v568
        %v570 = vpop.f32.mrf.mxu0
        %v571 = vpop.f32.mrf.mxu0
        %v572 = vadd.f32 0.0, %v571
        %v573 = vpop.f32.mrf.mxu0
        %574 = vmatprep.mubr.bf16.mxu0 0
        %575 = vmatmul.mubr.bf16.gmra.mxu0 %v494
        %v576 = vpop.f32.mrf.mxu0
        %v577 = vadd.f32 0.0, %v576
        %v578 = vpop.f32.mrf.mxu0
        %v579 = vpop.f32.mrf.mxu0
        %v580 = vadd.f32 0.0, %v579
        %v581 = vpop.f32.mrf.mxu0
        %582 = vmatprep.mubr.bf16.mxu0 0
        %583 = vmatmul.mubr.bf16.gmra.mxu0 %v497
        %v584 = vpop.f32.mrf.mxu0
        %v585 = vadd.f32 0.0, %v584
        %v586 = vpop.f32.mrf.mxu0
        %v587 = vpop.f32.mrf.mxu0
        %v588 = vadd.f32 0.0, %v587
        %v589 = vpop.f32.mrf.mxu0
        %590 = vmatprep.mubr.bf16.mxu0 0
        %591 = vmatmul.mubr.bf16.gmra.mxu0 %v500
        %v592 = vpop.f32.mrf.mxu0
        %v593 = vadd.f32 0.0, %v592
        %v594 = vpop.f32.mrf.mxu0
        %v595 = vpop.f32.mrf.mxu0
        %v596 = vadd.f32 0.0, %v595
        %v597 = vpop.f32.mrf.mxu0
        %598 = vdwg.mxu0
        %v607 = vunpack.c.l.b16 %v348
        %v608 = vunpack.c.l.b16 %v349
        %v609 = vunpack.c.l.b16 %v350
        %v610 = vunpack.c.l.b16 %v351
        %v611 = vunpack.c.l.b16 %v352
        %v612 = vunpack.c.l.b16 %v353
        %v613 = vunpack.c.l.b16 %v354
        %v614 = vunpack.c.l.b16 %v355
        %v615 = vpack.c.b16 %v608, %v607
        %v616 = vpack.c.b16 %v610, %v609
        %v617 = vpack.c.b16 %v612, %v611
        %v618 = vpack.c.b16 %v614, %v613
        %v624 = vsel %vm477, %v340, 0
        %v627 = vsel %vm477, %v341, 0
        %v630 = vsel %vm477, %v342, 0
        %v633 = vsel %vm477, %v343, 0
        %v636 = vsel %vm477, %v344, 0
        %v639 = vsel %vm477, %v345, 0
        %v642 = vsel %vm477, %v346, 0
        %v645 = vsel %vm477, %v347, 0
        %647 = vmatprep.subr.bf16.mxu0 0
        %648 = vmatpush1.bf16.msra.mxu0 0
        %649 = vmatprep.subr.bf16.mxu0 0
        %650 = vmatpush1.bf16.msra.mxu0 0
        %651 = vmatprep.subr.bf16.mxu0 0
        %652 = vmatpush1.bf16.msra.mxu0 0
        %653 = vmatprep.subr.bf16.mxu0 0
        %654 = vmatpush1.bf16.msra.mxu0 0
        %655 = vmatprep.subr.bf16.mxu0 0
        %656 = vmatpush1.bf16.msra.mxu0 %v618
        %657 = vmatprep.subr.bf16.mxu0 0
        %658 = vmatpush1.bf16.msra.mxu0 %v617
        %659 = vmatprep.subr.bf16.mxu0 0
        %660 = vmatpush1.bf16.msra.mxu0 %v616
        %661 = vmatprep.subr.bf16.mxu0 0
        %662 = vmatpush1.bf16.msra.mxu0 %v615
        %663 = vmatprep.subr.bf16.mxu0 0
        %664 = vmatpush2.bf16.msra.mxu0 0
        %665 = vmatprep.subr.bf16.mxu0 0
        %666 = vmatpush2.bf16.msra.mxu0 0
        %667 = vmatprep.subr.bf16.mxu0 0
        %668 = vmatpush2.bf16.msra.mxu0 0
        %669 = vmatprep.subr.bf16.mxu0 0
        %670 = vmatpush2.bf16.msra.mxu0 0
        %671 = vmatprep.subr.bf16.mxu0 0
        %672 = vmatpush2.bf16.msra.mxu0 0
        %673 = vmatprep.subr.bf16.mxu0 0
        %674 = vmatpush2.bf16.msra.mxu0 0
        %675 = vmatprep.subr.bf16.mxu0 0
        %676 = vmatpush2.bf16.msra.mxu0 0
        %677 = vmatprep.subr.bf16.mxu0 0
        %678 = vmatpush2.bf16.msra.mxu0 0
        %679 = vmatprep.mubr.bf16.mxu0 0
        %680 = vmatmul.mubr.bf16.gmra.mxu0 %v624
        %v681 = vpop.f32.mrf.mxu0
        %v682 = vadd.f32 %v537, %v681
        %v683 = vpop.f32.mrf.mxu0
        %v684 = vpop.f32.mrf.mxu0
        %v685 = vadd.f32 %v540, %v684
        %v686 = vpop.f32.mrf.mxu0
        %687 = vmatprep.mubr.bf16.mxu0 0
        %688 = vmatmul.mubr.bf16.gmra.mxu0 %v627
        %v689 = vpop.f32.mrf.mxu0
        %v690 = vadd.f32 %v545, %v689
        %v691 = vpop.f32.mrf.mxu0
        %v692 = vpop.f32.mrf.mxu0
        %v693 = vadd.f32 %v548, %v692
        %v694 = vpop.f32.mrf.mxu0
        %695 = vmatprep.mubr.bf16.mxu0 0
        %696 = vmatmul.mubr.bf16.gmra.mxu0 %v630
        %v697 = vpop.f32.mrf.mxu0
        %v698 = vadd.f32 %v553, %v697
        %v699 = vpop.f32.mrf.mxu0
        %v700 = vpop.f32.mrf.mxu0
        %v701 = vadd.f32 %v556, %v700
        %v702 = vpop.f32.mrf.mxu0
        %703 = vmatprep.mubr.bf16.mxu0 0
        %704 = vmatmul.mubr.bf16.gmra.mxu0 %v633
        %v705 = vpop.f32.mrf.mxu0
        %v706 = vadd.f32 %v561, %v705
        %v707 = vpop.f32.mrf.mxu0
        %v708 = vpop.f32.mrf.mxu0
        %v709 = vadd.f32 %v564, %v708
        %v710 = vpop.f32.mrf.mxu0
        %711 = vmatprep.mubr.bf16.mxu0 0
        %712 = vmatmul.mubr.bf16.gmra.mxu0 %v636
        %v713 = vpop.f32.mrf.mxu0
        %v714 = vadd.f32 %v569, %v713
        %v715 = vpop.f32.mrf.mxu0
        %v716 = vpop.f32.mrf.mxu0
        %v717 = vadd.f32 %v572, %v716
        %v718 = vpop.f32.mrf.mxu0
        %719 = vmatprep.mubr.bf16.mxu0 0
        %720 = vmatmul.mubr.bf16.gmra.mxu0 %v639
        %v721 = vpop.f32.mrf.mxu0
        %v722 = vadd.f32 %v577, %v721
        %v723 = vpop.f32.mrf.mxu0
        %v724 = vpop.f32.mrf.mxu0
        %v725 = vadd.f32 %v580, %v724
        %v726 = vpop.f32.mrf.mxu0
        %727 = vmatprep.mubr.bf16.mxu0 0
        %728 = vmatmul.mubr.bf16.gmra.mxu0 %v642
        %v729 = vpop.f32.mrf.mxu0
        %v730 = vadd.f32 %v585, %v729
        %v731 = vpop.f32.mrf.mxu0
        %v732 = vpop.f32.mrf.mxu0
        %v733 = vadd.f32 %v588, %v732
        %v734 = vpop.f32.mrf.mxu0
        %735 = vmatprep.mubr.bf16.mxu0 0
        %736 = vmatmul.mubr.bf16.gmra.mxu0 %v645
        %v737 = vpop.f32.mrf.mxu0
        %v738 = vadd.f32 %v593, %v737
        %v739 = vpop.f32.mrf.mxu0
        %v740 = vpop.f32.mrf.mxu0
        %v741 = vadd.f32 %v596, %v740
        %v742 = vpop.f32.mrf.mxu0
        %743 = vdwg.mxu0
        %744 = vset.pattern.permute.xlu0 2
        %745 = vperm.xlu0 %744, %v242
        %v746 = vpop.permute.xlu0 %745
        %747 = vset.pattern.permute.xlu0 2
        %748 = vperm.xlu0 %747, %v243
        %v749 = vpop.permute.xlu0 %748
        %750 = vset.pattern.permute.xlu0 2
        %751 = vperm.xlu0 %750, %v244
        %v752 = vpop.permute.xlu0 %751
        %753 = vset.pattern.permute.xlu0 2
        %754 = vperm.xlu0 %753, %v245
        %v755 = vpop.permute.xlu0 %754
        %756 = vset.pattern.permute.xlu0 2
        %757 = vperm.xlu0 %756, %v246
        %v758 = vpop.permute.xlu0 %757
        %759 = vset.pattern.permute.xlu0 2
        %760 = vperm.xlu0 %759, %v247
        %v761 = vpop.permute.xlu0 %760
        %762 = vset.pattern.permute.xlu0 2
        %763 = vperm.xlu0 %762, %v248
        %v764 = vpop.permute.xlu0 %763
        %765 = vset.pattern.permute.xlu0 2
        %766 = vperm.xlu0 %765, %v249
        %v767 = vpop.permute.xlu0 %766
        %768 = vset.pattern.permute.xlu0 2
        %769 = vperm.xlu0 %768, %v250
        %v770 = vpop.permute.xlu0 %769
        %771 = vset.pattern.permute.xlu0 2
        %772 = vperm.xlu0 %771, %v251
        %v773 = vpop.permute.xlu0 %772
        %774 = vset.pattern.permute.xlu0 2
        %775 = vperm.xlu0 %774, %v252
        %v776 = vpop.permute.xlu0 %775
        %777 = vset.pattern.permute.xlu0 2
        %778 = vperm.xlu0 %777, %v253
        %v779 = vpop.permute.xlu0 %778
        %780 = vset.pattern.permute.xlu0 2
        %781 = vperm.xlu0 %780, %v254
        %v782 = vpop.permute.xlu0 %781
        %783 = vset.pattern.permute.xlu0 2
        %784 = vperm.xlu0 %783, %v255
        %v785 = vpop.permute.xlu0 %784
        %786 = vset.pattern.permute.xlu0 2
        %787 = vperm.xlu0 %786, %v256
        %v788 = vpop.permute.xlu0 %787
        %789 = vset.pattern.permute.xlu0 2
        %790 = vperm.xlu0 %789, %v257
        %v791 = vpop.permute.xlu0 %790
        %vm792 = vcmp.eq.s32.totalorder %v259, %v746
        %vm793 = vcmp.eq.s32.totalorder %v259, %v749
        %vm794 = vcmp.eq.s32.totalorder %v259, %v752
        %vm795 = vcmp.eq.s32.totalorder %v259, %v755
        %vm796 = vcmp.eq.s32.totalorder %v259, %v758
        %vm797 = vcmp.eq.s32.totalorder %v259, %v761
        %vm798 = vcmp.eq.s32.totalorder %v259, %v764
        %vm799 = vcmp.eq.s32.totalorder %v259, %v767
        %vm800 = vcmp.eq.s32.totalorder %v259, %v770
        %vm801 = vcmp.eq.s32.totalorder %v259, %v773
        %vm802 = vcmp.eq.s32.totalorder %v259, %v776
        %vm803 = vcmp.eq.s32.totalorder %v259, %v779
        %vm804 = vcmp.eq.s32.totalorder %v259, %v782
        %vm805 = vcmp.eq.s32.totalorder %v259, %v785
        %vm806 = vcmp.eq.s32.totalorder %v259, %v788
        %vm807 = vcmp.eq.s32.totalorder %v259, %v791
        %v808 = vsel %vm792, 1.0, 0.0
        %v809 = vsel %vm793, 1.0, 0.0
        %v810 = vsel %vm794, 1.0, 0.0
        %v811 = vsel %vm795, 1.0, 0.0
        %v812 = vsel %vm796, 1.0, 0.0
        %v813 = vsel %vm797, 1.0, 0.0
        %v814 = vsel %vm798, 1.0, 0.0
        %v815 = vsel %vm799, 1.0, 0.0
        %v816 = vsel %vm800, 1.0, 0.0
        %v817 = vsel %vm801, 1.0, 0.0
        %v818 = vsel %vm802, 1.0, 0.0
        %v819 = vsel %vm803, 1.0, 0.0
        %v820 = vsel %vm804, 1.0, 0.0
        %v821 = vsel %vm805, 1.0, 0.0
        %v822 = vsel %vm806, 1.0, 0.0
        %v823 = vsel %vm807, 1.0, 0.0
        %v824 = vpack.c.bf16 %v809, %v808
        %v825 = vpack.c.bf16 %v811, %v810
        %v826 = vpack.c.bf16 %v813, %v812
        %v827 = vpack.c.bf16 %v815, %v814
        %v828 = vpack.c.bf16 %v817, %v816
        %v829 = vpack.c.bf16 %v819, %v818
        %v830 = vpack.c.bf16 %v821, %v820
        %v831 = vpack.c.bf16 %v823, %v822
        %s832 = scalar_lea.vmem %s1, 64
        %v833 = vld [vmem:[%s832] sm:$0xf]
        %v834 = vld [vmem:[%s832 + $0x4] sm:$0xf]
        %v835 = vld [vmem:[%s832 + $0x8] sm:$0xf]
        %v836 = vld [vmem:[%s832 + $0xc] sm:$0xf]
        %v837 = vld [vmem:[%s832 + $0x10] sm:$0xf]
        %v838 = vld [vmem:[%s832 + $0x14] sm:$0xf]
        %v839 = vld [vmem:[%s832 + $0x18] sm:$0xf]
        %v840 = vld [vmem:[%s832 + $0x1c] sm:$0xf]
        %v849 = vunpack.c.l.b16 %v833
        %v850 = vunpack.c.l.b16 %v834
        %v851 = vunpack.c.l.b16 %v835
        %v852 = vunpack.c.l.b16 %v836
        %v853 = vunpack.c.l.b16 %v837
        %v854 = vunpack.c.l.b16 %v838
        %v855 = vunpack.c.l.b16 %v839
        %v856 = vunpack.c.l.b16 %v840
        %v857 = vpack.c.b16 %v850, %v849
        %v858 = vpack.c.b16 %v852, %v851
        %v859 = vpack.c.b16 %v854, %v853
        %v860 = vpack.c.b16 %v856, %v855
        %v866 = vsel %vm477, %v824, 0
        %v869 = vsel %vm477, %v825, 0
        %v872 = vsel %vm477, %v826, 0
        %v875 = vsel %vm477, %v827, 0
        %v878 = vsel %vm477, %v828, 0
        %v881 = vsel %vm477, %v829, 0
        %v884 = vsel %vm477, %v830, 0
        %v887 = vsel %vm477, %v831, 0
        %889 = vmatprep.subr.bf16.mxu0 0
        %890 = vmatpush1.bf16.msra.mxu0 0
        %891 = vmatprep.subr.bf16.mxu0 0
        %892 = vmatpush1.bf16.msra.mxu0 0
        %893 = vmatprep.subr.bf16.mxu0 0
        %894 = vmatpush1.bf16.msra.mxu0 0
        %895 = vmatprep.subr.bf16.mxu0 0
        %896 = vmatpush1.bf16.msra.mxu0 0
        %897 = vmatprep.subr.bf16.mxu0 0
        %898 = vmatpush1.bf16.msra.mxu0 %v860
        %899 = vmatprep.subr.bf16.mxu0 0
        %900 = vmatpush1.bf16.msra.mxu0 %v859
        %901 = vmatprep.subr.bf16.mxu0 0
        %902 = vmatpush1.bf16.msra.mxu0 %v858
        %903 = vmatprep.subr.bf16.mxu0 0
        %904 = vmatpush1.bf16.msra.mxu0 %v857
        %905 = vmatprep.subr.bf16.mxu0 0
        %906 = vmatpush2.bf16.msra.mxu0 0
        %907 = vmatprep.subr.bf16.mxu0 0
        %908 = vmatpush2.bf16.msra.mxu0 0
        %909 = vmatprep.subr.bf16.mxu0 0
        %910 = vmatpush2.bf16.msra.mxu0 0
        %911 = vmatprep.subr.bf16.mxu0 0
        %912 = vmatpush2.bf16.msra.mxu0 0
        %913 = vmatprep.subr.bf16.mxu0 0
        %914 = vmatpush2.bf16.msra.mxu0 0
        %915 = vmatprep.subr.bf16.mxu0 0
        %916 = vmatpush2.bf16.msra.mxu0 0
        %917 = vmatprep.subr.bf16.mxu0 0
        %918 = vmatpush2.bf16.msra.mxu0 0
        %919 = vmatprep.subr.bf16.mxu0 0
        %920 = vmatpush2.bf16.msra.mxu0 0
        %921 = vmatprep.mubr.bf16.mxu0 0
        %922 = vmatmul.mubr.bf16.gmra.mxu0 %v866
        %v923 = vpop.f32.mrf.mxu0
        %v924 = vadd.f32 0.0, %v923
        %v925 = vpop.f32.mrf.mxu0
        %v926 = vpop.f32.mrf.mxu0
        %v927 = vadd.f32 0.0, %v926
        %v928 = vpop.f32.mrf.mxu0
        %929 = vmatprep.mubr.bf16.mxu0 0
        %930 = vmatmul.mubr.bf16.gmra.mxu0 %v869
        %v931 = vpop.f32.mrf.mxu0
        %v932 = vadd.f32 0.0, %v931
        %v933 = vpop.f32.mrf.mxu0
        %v934 = vpop.f32.mrf.mxu0
        %v935 = vadd.f32 0.0, %v934
        %v936 = vpop.f32.mrf.mxu0
        %937 = vmatprep.mubr.bf16.mxu0 0
        %938 = vmatmul.mubr.bf16.gmra.mxu0 %v872
        %v939 = vpop.f32.mrf.mxu0
        %v940 = vadd.f32 0.0, %v939
        %v941 = vpop.f32.mrf.mxu0
        %v942 = vpop.f32.mrf.mxu0
        %v943 = vadd.f32 0.0, %v942
        %v944 = vpop.f32.mrf.mxu0
        %945 = vmatprep.mubr.bf16.mxu0 0
        %946 = vmatmul.mubr.bf16.gmra.mxu0 %v875
        %v947 = vpop.f32.mrf.mxu0
        %v948 = vadd.f32 0.0, %v947
        %v949 = vpop.f32.mrf.mxu0
        %v950 = vpop.f32.mrf.mxu0
        %v951 = vadd.f32 0.0, %v950
        %v952 = vpop.f32.mrf.mxu0
        %953 = vmatprep.mubr.bf16.mxu0 0
        %954 = vmatmul.mubr.bf16.gmra.mxu0 %v878
        %v955 = vpop.f32.mrf.mxu0
        %v956 = vadd.f32 0.0, %v955
        %v957 = vpop.f32.mrf.mxu0
        %v958 = vpop.f32.mrf.mxu0
        %v959 = vadd.f32 0.0, %v958
        %v960 = vpop.f32.mrf.mxu0
        %961 = vmatprep.mubr.bf16.mxu0 0
        %962 = vmatmul.mubr.bf16.gmra.mxu0 %v881
        %v963 = vpop.f32.mrf.mxu0
        %v964 = vadd.f32 0.0, %v963
        %v965 = vpop.f32.mrf.mxu0
        %v966 = vpop.f32.mrf.mxu0
        %v967 = vadd.f32 0.0, %v966
        %v968 = vpop.f32.mrf.mxu0
        %969 = vmatprep.mubr.bf16.mxu0 0
        %970 = vmatmul.mubr.bf16.gmra.mxu0 %v884
        %v971 = vpop.f32.mrf.mxu0
        %v972 = vadd.f32 0.0, %v971
        %v973 = vpop.f32.mrf.mxu0
        %v974 = vpop.f32.mrf.mxu0
        %v975 = vadd.f32 0.0, %v974
        %v976 = vpop.f32.mrf.mxu0
        %977 = vmatprep.mubr.bf16.mxu0 0
        %978 = vmatmul.mubr.bf16.gmra.mxu0 %v887
        %v979 = vpop.f32.mrf.mxu0
        %v980 = vadd.f32 0.0, %v979
        %v981 = vpop.f32.mrf.mxu0
        %v982 = vpop.f32.mrf.mxu0
        %v983 = vadd.f32 0.0, %v982
        %v984 = vpop.f32.mrf.mxu0
        %985 = vdwg.mxu0
        %v986 = vadd.f32 %v682, %v924
        %v987 = vadd.f32 %v685, %v927
        %v988 = vadd.f32 %v690, %v932
        %v989 = vadd.f32 %v693, %v935
        %v990 = vadd.f32 %v698, %v940
        %v991 = vadd.f32 %v701, %v943
        %v992 = vadd.f32 %v706, %v948
        %v993 = vadd.f32 %v709, %v951
        %v994 = vadd.f32 %v714, %v956
        %v995 = vadd.f32 %v717, %v959
        %v996 = vadd.f32 %v722, %v964
        %v997 = vadd.f32 %v725, %v967
        %v998 = vadd.f32 %v730, %v972
        %v999 = vadd.f32 %v733, %v975
        %v1000 = vadd.f32 %v738, %v980
        %v1001 = vadd.f32 %v741, %v983
        %1002 = vset.pattern.permute.xlu0 3
        %1003 = vperm.xlu0 %1002, %v242
        %v1004 = vpop.permute.xlu0 %1003
        %1005 = vset.pattern.permute.xlu0 3
        %1006 = vperm.xlu0 %1005, %v243
        %v1007 = vpop.permute.xlu0 %1006
        %1008 = vset.pattern.permute.xlu0 3
        %1009 = vperm.xlu0 %1008, %v244
        %v1010 = vpop.permute.xlu0 %1009
        %1011 = vset.pattern.permute.xlu0 3
        %1012 = vperm.xlu0 %1011, %v245
        %v1013 = vpop.permute.xlu0 %1012
        %1014 = vset.pattern.permute.xlu0 3
        %1015 = vperm.xlu0 %1014, %v246
        %v1016 = vpop.permute.xlu0 %1015
        %1017 = vset.pattern.permute.xlu0 3
        %1018 = vperm.xlu0 %1017, %v247
        %v1019 = vpop.permute.xlu0 %1018
        %1020 = vset.pattern.permute.xlu0 3
        %1021 = vperm.xlu0 %1020, %v248
        %v1022 = vpop.permute.xlu0 %1021
        %1023 = vset.pattern.permute.xlu0 3
        %1024 = vperm.xlu0 %1023, %v249
        %v1025 = vpop.permute.xlu0 %1024
        %1026 = vset.pattern.permute.xlu0 3
        %1027 = vperm.xlu0 %1026, %v250
        %v1028 = vpop.permute.xlu0 %1027
        %1029 = vset.pattern.permute.xlu0 3
        %1030 = vperm.xlu0 %1029, %v251
        %v1031 = vpop.permute.xlu0 %1030
        %1032 = vset.pattern.permute.xlu0 3
        %1033 = vperm.xlu0 %1032, %v252
        %v1034 = vpop.permute.xlu0 %1033
        %1035 = vset.pattern.permute.xlu0 3
        %1036 = vperm.xlu0 %1035, %v253
        %v1037 = vpop.permute.xlu0 %1036
        %1038 = vset.pattern.permute.xlu0 3
        %1039 = vperm.xlu0 %1038, %v254
        %v1040 = vpop.permute.xlu0 %1039
        %1041 = vset.pattern.permute.xlu0 3
        %1042 = vperm.xlu0 %1041, %v255
        %v1043 = vpop.permute.xlu0 %1042
        %1044 = vset.pattern.permute.xlu0 3
        %1045 = vperm.xlu0 %1044, %v256
        %v1046 = vpop.permute.xlu0 %1045
        %1047 = vset.pattern.permute.xlu0 3
        %1048 = vperm.xlu0 %1047, %v257
        %v1049 = vpop.permute.xlu0 %1048
        %vm1050 = vcmp.eq.s32.totalorder %v259, %v1004
        %vm1051 = vcmp.eq.s32.totalorder %v259, %v1007
        %vm1052 = vcmp.eq.s32.totalorder %v259, %v1010
        %vm1053 = vcmp.eq.s32.totalorder %v259, %v1013
        %vm1054 = vcmp.eq.s32.totalorder %v259, %v1016
        %vm1055 = vcmp.eq.s32.totalorder %v259, %v1019
        %vm1056 = vcmp.eq.s32.totalorder %v259, %v1022
        %vm1057 = vcmp.eq.s32.totalorder %v259, %v1025
        %vm1058 = vcmp.eq.s32.totalorder %v259, %v1028
        %vm1059 = vcmp.eq.s32.totalorder %v259, %v1031
        %vm1060 = vcmp.eq.s32.totalorder %v259, %v1034
        %vm1061 = vcmp.eq.s32.totalorder %v259, %v1037
        %vm1062 = vcmp.eq.s32.totalorder %v259, %v1040
        %vm1063 = vcmp.eq.s32.totalorder %v259, %v1043
        %vm1064 = vcmp.eq.s32.totalorder %v259, %v1046
        %vm1065 = vcmp.eq.s32.totalorder %v259, %v1049
        %v1066 = vsel %vm1050, 1.0, 0.0
        %v1067 = vsel %vm1051, 1.0, 0.0
        %v1068 = vsel %vm1052, 1.0, 0.0
        %v1069 = vsel %vm1053, 1.0, 0.0
        %v1070 = vsel %vm1054, 1.0, 0.0
        %v1071 = vsel %vm1055, 1.0, 0.0
        %v1072 = vsel %vm1056, 1.0, 0.0
        %v1073 = vsel %vm1057, 1.0, 0.0
        %v1074 = vsel %vm1058, 1.0, 0.0
        %v1075 = vsel %vm1059, 1.0, 0.0
        %v1076 = vsel %vm1060, 1.0, 0.0
        %v1077 = vsel %vm1061, 1.0, 0.0
        %v1078 = vsel %vm1062, 1.0, 0.0
        %v1079 = vsel %vm1063, 1.0, 0.0
        %v1080 = vsel %vm1064, 1.0, 0.0
        %v1081 = vsel %vm1065, 1.0, 0.0
        %v1082 = vpack.c.bf16 %v1067, %v1066
        %v1083 = vpack.c.bf16 %v1069, %v1068
        %v1084 = vpack.c.bf16 %v1071, %v1070
        %v1085 = vpack.c.bf16 %v1073, %v1072
        %v1086 = vpack.c.bf16 %v1075, %v1074
        %v1087 = vpack.c.bf16 %v1077, %v1076
        %v1088 = vpack.c.bf16 %v1079, %v1078
        %v1089 = vpack.c.bf16 %v1081, %v1080
        %s1090 = scalar_lea.vmem %s1, 96
        %v1091 = vld [vmem:[%s1090] sm:$0xf]
        %v1092 = vld [vmem:[%s1090 + $0x4] sm:$0xf]
        %v1093 = vld [vmem:[%s1090 + $0x8] sm:$0xf]
        %v1094 = vld [vmem:[%s1090 + $0xc] sm:$0xf]
        %v1095 = vld [vmem:[%s1090 + $0x10] sm:$0xf]
        %v1096 = vld [vmem:[%s1090 + $0x14] sm:$0xf]
        %v1097 = vld [vmem:[%s1090 + $0x18] sm:$0xf]
        %v1098 = vld [vmem:[%s1090 + $0x1c] sm:$0xf]
        %v1107 = vunpack.c.l.b16 %v1091
        %v1108 = vunpack.c.l.b16 %v1092
        %v1109 = vunpack.c.l.b16 %v1093
        %v1110 = vunpack.c.l.b16 %v1094
        %v1111 = vunpack.c.l.b16 %v1095
        %v1112 = vunpack.c.l.b16 %v1096
        %v1113 = vunpack.c.l.b16 %v1097
        %v1114 = vunpack.c.l.b16 %v1098
        %v1115 = vpack.c.b16 %v1108, %v1107
        %v1116 = vpack.c.b16 %v1110, %v1109
        %v1117 = vpack.c.b16 %v1112, %v1111
        %v1118 = vpack.c.b16 %v1114, %v1113
        %v1124 = vsel %vm477, %v1082, 0
        %v1127 = vsel %vm477, %v1083, 0
        %v1130 = vsel %vm477, %v1084, 0
        %v1133 = vsel %vm477, %v1085, 0
        %v1136 = vsel %vm477, %v1086, 0
        %v1139 = vsel %vm477, %v1087, 0
        %v1142 = vsel %vm477, %v1088, 0
        %v1145 = vsel %vm477, %v1089, 0
        %1147 = vmatprep.subr.bf16.mxu0 0
        %1148 = vmatpush1.bf16.msra.mxu0 0
        %1149 = vmatprep.subr.bf16.mxu0 0
        %1150 = vmatpush1.bf16.msra.mxu0 0
        %1151 = vmatprep.subr.bf16.mxu0 0
        %1152 = vmatpush1.bf16.msra.mxu0 0
        %1153 = vmatprep.subr.bf16.mxu0 0
        %1154 = vmatpush1.bf16.msra.mxu0 0
        %1155 = vmatprep.subr.bf16.mxu0 0
        %1156 = vmatpush1.bf16.msra.mxu0 %v1118
        %1157 = vmatprep.subr.bf16.mxu0 0
        %1158 = vmatpush1.bf16.msra.mxu0 %v1117
        %1159 = vmatprep.subr.bf16.mxu0 0
        %1160 = vmatpush1.bf16.msra.mxu0 %v1116
        %1161 = vmatprep.subr.bf16.mxu0 0
        %1162 = vmatpush1.bf16.msra.mxu0 %v1115
        %1163 = vmatprep.subr.bf16.mxu0 0
        %1164 = vmatpush2.bf16.msra.mxu0 0
        %1165 = vmatprep.subr.bf16.mxu0 0
        %1166 = vmatpush2.bf16.msra.mxu0 0
        %1167 = vmatprep.subr.bf16.mxu0 0
        %1168 = vmatpush2.bf16.msra.mxu0 0
        %1169 = vmatprep.subr.bf16.mxu0 0
        %1170 = vmatpush2.bf16.msra.mxu0 0
        %1171 = vmatprep.subr.bf16.mxu0 0
        %1172 = vmatpush2.bf16.msra.mxu0 0
        %1173 = vmatprep.subr.bf16.mxu0 0
        %1174 = vmatpush2.bf16.msra.mxu0 0
        %1175 = vmatprep.subr.bf16.mxu0 0
        %1176 = vmatpush2.bf16.msra.mxu0 0
        %1177 = vmatprep.subr.bf16.mxu0 0
        %1178 = vmatpush2.bf16.msra.mxu0 0
        %1179 = vmatprep.mubr.bf16.mxu0 0
        %1180 = vmatmul.mubr.bf16.gmra.mxu0 %v1124
        %v1181 = vpop.f32.mrf.mxu0
        %v1182 = vadd.f32 0.0, %v1181
        %v1183 = vpop.f32.mrf.mxu0
        %v1184 = vpop.f32.mrf.mxu0
        %v1185 = vadd.f32 0.0, %v1184
        %v1186 = vpop.f32.mrf.mxu0
        %1187 = vmatprep.mubr.bf16.mxu0 0
        %1188 = vmatmul.mubr.bf16.gmra.mxu0 %v1127
        %v1189 = vpop.f32.mrf.mxu0
        %v1190 = vadd.f32 0.0, %v1189
        %v1191 = vpop.f32.mrf.mxu0
        %v1192 = vpop.f32.mrf.mxu0
        %v1193 = vadd.f32 0.0, %v1192
        %v1194 = vpop.f32.mrf.mxu0
        %1195 = vmatprep.mubr.bf16.mxu0 0
        %1196 = vmatmul.mubr.bf16.gmra.mxu0 %v1130
        %v1197 = vpop.f32.mrf.mxu0
        %v1198 = vadd.f32 0.0, %v1197
        %v1199 = vpop.f32.mrf.mxu0
        %v1200 = vpop.f32.mrf.mxu0
        %v1201 = vadd.f32 0.0, %v1200
        %v1202 = vpop.f32.mrf.mxu0
        %1203 = vmatprep.mubr.bf16.mxu0 0
        %1204 = vmatmul.mubr.bf16.gmra.mxu0 %v1133
        %v1205 = vpop.f32.mrf.mxu0
        %v1206 = vadd.f32 0.0, %v1205
        %v1207 = vpop.f32.mrf.mxu0
        %v1208 = vpop.f32.mrf.mxu0
        %v1209 = vadd.f32 0.0, %v1208
        %v1210 = vpop.f32.mrf.mxu0
        %1211 = vmatprep.mubr.bf16.mxu0 0
        %1212 = vmatmul.mubr.bf16.gmra.mxu0 %v1136
        %v1213 = vpop.f32.mrf.mxu0
        %v1214 = vadd.f32 0.0, %v1213
        %v1215 = vpop.f32.mrf.mxu0
        %v1216 = vpop.f32.mrf.mxu0
        %v1217 = vadd.f32 0.0, %v1216
        %v1218 = vpop.f32.mrf.mxu0
        %1219 = vmatprep.mubr.bf16.mxu0 0
        %1220 = vmatmul.mubr.bf16.gmra.mxu0 %v1139
        %v1221 = vpop.f32.mrf.mxu0
        %v1222 = vadd.f32 0.0, %v1221
        %v1223 = vpop.f32.mrf.mxu0
        %v1224 = vpop.f32.mrf.mxu0
        %v1225 = vadd.f32 0.0, %v1224
        %v1226 = vpop.f32.mrf.mxu0
        %1227 = vmatprep.mubr.bf16.mxu0 0
        %1228 = vmatmul.mubr.bf16.gmra.mxu0 %v1142
        %v1229 = vpop.f32.mrf.mxu0
        %v1230 = vadd.f32 0.0, %v1229
        %v1231 = vpop.f32.mrf.mxu0
        %v1232 = vpop.f32.mrf.mxu0
        %v1233 = vadd.f32 0.0, %v1232
        %v1234 = vpop.f32.mrf.mxu0
        %1235 = vmatprep.mubr.bf16.mxu0 0
        %1236 = vmatmul.mubr.bf16.gmra.mxu0 %v1145
        %v1237 = vpop.f32.mrf.mxu0
        %v1238 = vadd.f32 0.0, %v1237
        %v1239 = vpop.f32.mrf.mxu0
        %v1240 = vpop.f32.mrf.mxu0
        %v1241 = vadd.f32 0.0, %v1240
        %v1242 = vpop.f32.mrf.mxu0
        %1243 = vdwg.mxu0
        %v1244 = vadd.f32 %v986, %v1182
        %v1245 = vadd.f32 %v987, %v1185
        %v1246 = vadd.f32 %v988, %v1190
        %v1247 = vadd.f32 %v989, %v1193
        %v1248 = vadd.f32 %v990, %v1198
        %v1249 = vadd.f32 %v991, %v1201
        %v1250 = vadd.f32 %v992, %v1206
        %v1251 = vadd.f32 %v993, %v1209
        %v1252 = vadd.f32 %v994, %v1214
        %v1253 = vadd.f32 %v995, %v1217
        %v1254 = vadd.f32 %v996, %v1222
        %v1255 = vadd.f32 %v997, %v1225
        %v1256 = vadd.f32 %v998, %v1230
        %v1257 = vadd.f32 %v999, %v1233
        %v1258 = vadd.f32 %v1000, %v1238
        %v1259 = vadd.f32 %v1001, %v1241
        %1260 = vset.pattern.permute.xlu0 4
        %1261 = vperm.xlu0 %1260, %v242
        %v1262 = vpop.permute.xlu0 %1261
        %1263 = vset.pattern.permute.xlu0 4
        %1264 = vperm.xlu0 %1263, %v243
        %v1265 = vpop.permute.xlu0 %1264
        %1266 = vset.pattern.permute.xlu0 4
        %1267 = vperm.xlu0 %1266, %v244
        %v1268 = vpop.permute.xlu0 %1267
        %1269 = vset.pattern.permute.xlu0 4
        %1270 = vperm.xlu0 %1269, %v245
        %v1271 = vpop.permute.xlu0 %1270
        %1272 = vset.pattern.permute.xlu0 4
        %1273 = vperm.xlu0 %1272, %v246
        %v1274 = vpop.permute.xlu0 %1273
        %1275 = vset.pattern.permute.xlu0 4
        %1276 = vperm.xlu0 %1275, %v247
        %v1277 = vpop.permute.xlu0 %1276
        %1278 = vset.pattern.permute.xlu0 4
        %1279 = vperm.xlu0 %1278, %v248
        %v1280 = vpop.permute.xlu0 %1279
        %1281 = vset.pattern.permute.xlu0 4
        %1282 = vperm.xlu0 %1281, %v249
        %v1283 = vpop.permute.xlu0 %1282
        %1284 = vset.pattern.permute.xlu0 4
        %1285 = vperm.xlu0 %1284, %v250
        %v1286 = vpop.permute.xlu0 %1285
        %1287 = vset.pattern.permute.xlu0 4
        %1288 = vperm.xlu0 %1287, %v251
        %v1289 = vpop.permute.xlu0 %1288
        %1290 = vset.pattern.permute.xlu0 4
        %1291 = vperm.xlu0 %1290, %v252
        %v1292 = vpop.permute.xlu0 %1291
        %1293 = vset.pattern.permute.xlu0 4
        %1294 = vperm.xlu0 %1293, %v253
        %v1295 = vpop.permute.xlu0 %1294
        %1296 = vset.pattern.permute.xlu0 4
        %1297 = vperm.xlu0 %1296, %v254
        %v1298 = vpop.permute.xlu0 %1297
        %1299 = vset.pattern.permute.xlu0 4
        %1300 = vperm.xlu0 %1299, %v255
        %v1301 = vpop.permute.xlu0 %1300
        %1302 = vset.pattern.permute.xlu0 4
        %1303 = vperm.xlu0 %1302, %v256
        %v1304 = vpop.permute.xlu0 %1303
        %1305 = vset.pattern.permute.xlu0 4
        %1306 = vperm.xlu0 %1305, %v257
        %v1307 = vpop.permute.xlu0 %1306
        %vm1308 = vcmp.eq.s32.totalorder %v259, %v1262
        %vm1309 = vcmp.eq.s32.totalorder %v259, %v1265
        %vm1310 = vcmp.eq.s32.totalorder %v259, %v1268
        %vm1311 = vcmp.eq.s32.totalorder %v259, %v1271
        %vm1312 = vcmp.eq.s32.totalorder %v259, %v1274
        %vm1313 = vcmp.eq.s32.totalorder %v259, %v1277
        %vm1314 = vcmp.eq.s32.totalorder %v259, %v1280
        %vm1315 = vcmp.eq.s32.totalorder %v259, %v1283
        %vm1316 = vcmp.eq.s32.totalorder %v259, %v1286
        %vm1317 = vcmp.eq.s32.totalorder %v259, %v1289
        %vm1318 = vcmp.eq.s32.totalorder %v259, %v1292
        %vm1319 = vcmp.eq.s32.totalorder %v259, %v1295
        %vm1320 = vcmp.eq.s32.totalorder %v259, %v1298
        %vm1321 = vcmp.eq.s32.totalorder %v259, %v1301
        %vm1322 = vcmp.eq.s32.totalorder %v259, %v1304
        %vm1323 = vcmp.eq.s32.totalorder %v259, %v1307
        %v1324 = vsel %vm1308, 1.0, 0.0
        %v1325 = vsel %vm1309, 1.0, 0.0
        %v1326 = vsel %vm1310, 1.0, 0.0
        %v1327 = vsel %vm1311, 1.0, 0.0
        %v1328 = vsel %vm1312, 1.0, 0.0
        %v1329 = vsel %vm1313, 1.0, 0.0
        %v1330 = vsel %vm1314, 1.0, 0.0
        %v1331 = vsel %vm1315, 1.0, 0.0
        %v1332 = vsel %vm1316, 1.0, 0.0
        %v1333 = vsel %vm1317, 1.0, 0.0
        %v1334 = vsel %vm1318, 1.0, 0.0
        %v1335 = vsel %vm1319, 1.0, 0.0
        %v1336 = vsel %vm1320, 1.0, 0.0
        %v1337 = vsel %vm1321, 1.0, 0.0
        %v1338 = vsel %vm1322, 1.0, 0.0
        %v1339 = vsel %vm1323, 1.0, 0.0
        %v1340 = vpack.c.bf16 %v1325, %v1324
        %v1341 = vpack.c.bf16 %v1327, %v1326
        %v1342 = vpack.c.bf16 %v1329, %v1328
        %v1343 = vpack.c.bf16 %v1331, %v1330
        %v1344 = vpack.c.bf16 %v1333, %v1332
        %v1345 = vpack.c.bf16 %v1335, %v1334
        %v1346 = vpack.c.bf16 %v1337, %v1336
        %v1347 = vpack.c.bf16 %v1339, %v1338
        %s1348 = scalar_lea.vmem %s1, 128
        %v1349 = vld [vmem:[%s1348] sm:$0xf]
        %v1350 = vld [vmem:[%s1348 + $0x4] sm:$0xf]
        %v1351 = vld [vmem:[%s1348 + $0x8] sm:$0xf]
        %v1352 = vld [vmem:[%s1348 + $0xc] sm:$0xf]
        %v1353 = vld [vmem:[%s1348 + $0x10] sm:$0xf]
        %v1354 = vld [vmem:[%s1348 + $0x14] sm:$0xf]
        %v1355 = vld [vmem:[%s1348 + $0x18] sm:$0xf]
        %v1356 = vld [vmem:[%s1348 + $0x1c] sm:$0xf]
        %v1365 = vunpack.c.l.b16 %v1349
        %v1366 = vunpack.c.l.b16 %v1350
        %v1367 = vunpack.c.l.b16 %v1351
        %v1368 = vunpack.c.l.b16 %v1352
        %v1369 = vunpack.c.l.b16 %v1353
        %v1370 = vunpack.c.l.b16 %v1354
        %v1371 = vunpack.c.l.b16 %v1355
        %v1372 = vunpack.c.l.b16 %v1356
        %v1373 = vpack.c.b16 %v1366, %v1365
        %v1374 = vpack.c.b16 %v1368, %v1367
        %v1375 = vpack.c.b16 %v1370, %v1369
        %v1376 = vpack.c.b16 %v1372, %v1371
        %v1382 = vsel %vm477, %v1340, 0
        %v1385 = vsel %vm477, %v1341, 0
        %v1388 = vsel %vm477, %v1342, 0
        %v1391 = vsel %vm477, %v1343, 0
        %v1394 = vsel %vm477, %v1344, 0
        %v1397 = vsel %vm477, %v1345, 0
        %v1400 = vsel %vm477, %v1346, 0
        %v1403 = vsel %vm477, %v1347, 0
        %1405 = vmatprep.subr.bf16.mxu0 0
        %1406 = vmatpush1.bf16.msra.mxu0 0
        %1407 = vmatprep.subr.bf16.mxu0 0
        %1408 = vmatpush1.bf16.msra.mxu0 0
        %1409 = vmatprep.subr.bf16.mxu0 0
        %1410 = vmatpush1.bf16.msra.mxu0 0
        %1411 = vmatprep.subr.bf16.mxu0 0
        %1412 = vmatpush1.bf16.msra.mxu0 0
        %1413 = vmatprep.subr.bf16.mxu0 0
        %1414 = vmatpush1.bf16.msra.mxu0 %v1376
        %1415 = vmatprep.subr.bf16.mxu0 0
        %1416 = vmatpush1.bf16.msra.mxu0 %v1375
        %1417 = vmatprep.subr.bf16.mxu0 0
        %1418 = vmatpush1.bf16.msra.mxu0 %v1374
        %1419 = vmatprep.subr.bf16.mxu0 0
        %1420 = vmatpush1.bf16.msra.mxu0 %v1373
        %1421 = vmatprep.subr.bf16.mxu0 0
        %1422 = vmatpush2.bf16.msra.mxu0 0
        %1423 = vmatprep.subr.bf16.mxu0 0
        %1424 = vmatpush2.bf16.msra.mxu0 0
        %1425 = vmatprep.subr.bf16.mxu0 0
        %1426 = vmatpush2.bf16.msra.mxu0 0
        %1427 = vmatprep.subr.bf16.mxu0 0
        %1428 = vmatpush2.bf16.msra.mxu0 0
        %1429 = vmatprep.subr.bf16.mxu0 0
        %1430 = vmatpush2.bf16.msra.mxu0 0
        %1431 = vmatprep.subr.bf16.mxu0 0
        %1432 = vmatpush2.bf16.msra.mxu0 0
        %1433 = vmatprep.subr.bf16.mxu0 0
        %1434 = vmatpush2.bf16.msra.mxu0 0
        %1435 = vmatprep.subr.bf16.mxu0 0
        %1436 = vmatpush2.bf16.msra.mxu0 0
        %1437 = vmatprep.mubr.bf16.mxu0 0
        %1438 = vmatmul.mubr.bf16.gmra.mxu0 %v1382
        %v1439 = vpop.f32.mrf.mxu0
        %v1440 = vadd.f32 0.0, %v1439
        %v1441 = vpop.f32.mrf.mxu0
        %v1442 = vpop.f32.mrf.mxu0
        %v1443 = vadd.f32 0.0, %v1442
        %v1444 = vpop.f32.mrf.mxu0
        %1445 = vmatprep.mubr.bf16.mxu0 0
        %1446 = vmatmul.mubr.bf16.gmra.mxu0 %v1385
        %v1447 = vpop.f32.mrf.mxu0
        %v1448 = vadd.f32 0.0, %v1447
        %v1449 = vpop.f32.mrf.mxu0
        %v1450 = vpop.f32.mrf.mxu0
        %v1451 = vadd.f32 0.0, %v1450
        %v1452 = vpop.f32.mrf.mxu0
        %1453 = vmatprep.mubr.bf16.mxu0 0
        %1454 = vmatmul.mubr.bf16.gmra.mxu0 %v1388
        %v1455 = vpop.f32.mrf.mxu0
        %v1456 = vadd.f32 0.0, %v1455
        %v1457 = vpop.f32.mrf.mxu0
        %v1458 = vpop.f32.mrf.mxu0
        %v1459 = vadd.f32 0.0, %v1458
        %v1460 = vpop.f32.mrf.mxu0
        %1461 = vmatprep.mubr.bf16.mxu0 0
        %1462 = vmatmul.mubr.bf16.gmra.mxu0 %v1391
        %v1463 = vpop.f32.mrf.mxu0
        %v1464 = vadd.f32 0.0, %v1463
        %v1465 = vpop.f32.mrf.mxu0
        %v1466 = vpop.f32.mrf.mxu0
        %v1467 = vadd.f32 0.0, %v1466
        %v1468 = vpop.f32.mrf.mxu0
        %1469 = vmatprep.mubr.bf16.mxu0 0
        %1470 = vmatmul.mubr.bf16.gmra.mxu0 %v1394
        %v1471 = vpop.f32.mrf.mxu0
        %v1472 = vadd.f32 0.0, %v1471
        %v1473 = vpop.f32.mrf.mxu0
        %v1474 = vpop.f32.mrf.mxu0
        %v1475 = vadd.f32 0.0, %v1474
        %v1476 = vpop.f32.mrf.mxu0
        %1477 = vmatprep.mubr.bf16.mxu0 0
        %1478 = vmatmul.mubr.bf16.gmra.mxu0 %v1397
        %v1479 = vpop.f32.mrf.mxu0
        %v1480 = vadd.f32 0.0, %v1479
        %v1481 = vpop.f32.mrf.mxu0
        %v1482 = vpop.f32.mrf.mxu0
        %v1483 = vadd.f32 0.0, %v1482
        %v1484 = vpop.f32.mrf.mxu0
        %1485 = vmatprep.mubr.bf16.mxu0 0
        %1486 = vmatmul.mubr.bf16.gmra.mxu0 %v1400
        %v1487 = vpop.f32.mrf.mxu0
        %v1488 = vadd.f32 0.0, %v1487
        %v1489 = vpop.f32.mrf.mxu0
        %v1490 = vpop.f32.mrf.mxu0
        %v1491 = vadd.f32 0.0, %v1490
        %v1492 = vpop.f32.mrf.mxu0
        %1493 = vmatprep.mubr.bf16.mxu0 0
        %1494 = vmatmul.mubr.bf16.gmra.mxu0 %v1403
        %v1495 = vpop.f32.mrf.mxu0
        %v1496 = vadd.f32 0.0, %v1495
        %v1497 = vpop.f32.mrf.mxu0
        %v1498 = vpop.f32.mrf.mxu0
        %v1499 = vadd.f32 0.0, %v1498
        %v1500 = vpop.f32.mrf.mxu0
        %1501 = vdwg.mxu0
        %v1502 = vadd.f32 %v1244, %v1440
        %v1503 = vadd.f32 %v1245, %v1443
        %v1504 = vadd.f32 %v1246, %v1448
        %v1505 = vadd.f32 %v1247, %v1451
        %v1506 = vadd.f32 %v1248, %v1456
        %v1507 = vadd.f32 %v1249, %v1459
        %v1508 = vadd.f32 %v1250, %v1464
        %v1509 = vadd.f32 %v1251, %v1467
        %v1510 = vadd.f32 %v1252, %v1472
        %v1511 = vadd.f32 %v1253, %v1475
        %v1512 = vadd.f32 %v1254, %v1480
        %v1513 = vadd.f32 %v1255, %v1483
        %v1514 = vadd.f32 %v1256, %v1488
        %v1515 = vadd.f32 %v1257, %v1491
        %v1516 = vadd.f32 %v1258, %v1496
        %v1517 = vadd.f32 %v1259, %v1499
        %1518 = vset.pattern.permute.xlu0 5
        %1519 = vperm.xlu0 %1518, %v242
        %v1520 = vpop.permute.xlu0 %1519
        %1521 = vset.pattern.permute.xlu0 5
        %1522 = vperm.xlu0 %1521, %v243
        %v1523 = vpop.permute.xlu0 %1522
        %1524 = vset.pattern.permute.xlu0 5
        %1525 = vperm.xlu0 %1524, %v244
        %v1526 = vpop.permute.xlu0 %1525
        %1527 = vset.pattern.permute.xlu0 5
        %1528 = vperm.xlu0 %1527, %v245
        %v1529 = vpop.permute.xlu0 %1528
        %1530 = vset.pattern.permute.xlu0 5
        %1531 = vperm.xlu0 %1530, %v246
        %v1532 = vpop.permute.xlu0 %1531
        %1533 = vset.pattern.permute.xlu0 5
        %1534 = vperm.xlu0 %1533, %v247
        %v1535 = vpop.permute.xlu0 %1534
        %1536 = vset.pattern.permute.xlu0 5
        %1537 = vperm.xlu0 %1536, %v248
        %v1538 = vpop.permute.xlu0 %1537
        %1539 = vset.pattern.permute.xlu0 5
        %1540 = vperm.xlu0 %1539, %v249
        %v1541 = vpop.permute.xlu0 %1540
        %1542 = vset.pattern.permute.xlu0 5
        %1543 = vperm.xlu0 %1542, %v250
        %v1544 = vpop.permute.xlu0 %1543
        %1545 = vset.pattern.permute.xlu0 5
        %1546 = vperm.xlu0 %1545, %v251
        %v1547 = vpop.permute.xlu0 %1546
        %1548 = vset.pattern.permute.xlu0 5
        %1549 = vperm.xlu0 %1548, %v252
        %v1550 = vpop.permute.xlu0 %1549
        %1551 = vset.pattern.permute.xlu0 5
        %1552 = vperm.xlu0 %1551, %v253
        %v1553 = vpop.permute.xlu0 %1552
        %1554 = vset.pattern.permute.xlu0 5
        %1555 = vperm.xlu0 %1554, %v254
        %v1556 = vpop.permute.xlu0 %1555
        %1557 = vset.pattern.permute.xlu0 5
        %1558 = vperm.xlu0 %1557, %v255
        %v1559 = vpop.permute.xlu0 %1558
        %1560 = vset.pattern.permute.xlu0 5
        %1561 = vperm.xlu0 %1560, %v256
        %v1562 = vpop.permute.xlu0 %1561
        %1563 = vset.pattern.permute.xlu0 5
        %1564 = vperm.xlu0 %1563, %v257
        %v1565 = vpop.permute.xlu0 %1564
        %vm1566 = vcmp.eq.s32.totalorder %v259, %v1520
        %vm1567 = vcmp.eq.s32.totalorder %v259, %v1523
        %vm1568 = vcmp.eq.s32.totalorder %v259, %v1526
        %vm1569 = vcmp.eq.s32.totalorder %v259, %v1529
        %vm1570 = vcmp.eq.s32.totalorder %v259, %v1532
        %vm1571 = vcmp.eq.s32.totalorder %v259, %v1535
        %vm1572 = vcmp.eq.s32.totalorder %v259, %v1538
        %vm1573 = vcmp.eq.s32.totalorder %v259, %v1541
        %vm1574 = vcmp.eq.s32.totalorder %v259, %v1544
        %vm1575 = vcmp.eq.s32.totalorder %v259, %v1547
        %vm1576 = vcmp.eq.s32.totalorder %v259, %v1550
        %vm1577 = vcmp.eq.s32.totalorder %v259, %v1553
        %vm1578 = vcmp.eq.s32.totalorder %v259, %v1556
        %vm1579 = vcmp.eq.s32.totalorder %v259, %v1559
        %vm1580 = vcmp.eq.s32.totalorder %v259, %v1562
        %vm1581 = vcmp.eq.s32.totalorder %v259, %v1565
        %v1582 = vsel %vm1566, 1.0, 0.0
        %v1583 = vsel %vm1567, 1.0, 0.0
        %v1584 = vsel %vm1568, 1.0, 0.0
        %v1585 = vsel %vm1569, 1.0, 0.0
        %v1586 = vsel %vm1570, 1.0, 0.0
        %v1587 = vsel %vm1571, 1.0, 0.0
        %v1588 = vsel %vm1572, 1.0, 0.0
        %v1589 = vsel %vm1573, 1.0, 0.0
        %v1590 = vsel %vm1574, 1.0, 0.0
        %v1591 = vsel %vm1575, 1.0, 0.0
        %v1592 = vsel %vm1576, 1.0, 0.0
        %v1593 = vsel %vm1577, 1.0, 0.0
        %v1594 = vsel %vm1578, 1.0, 0.0
        %v1595 = vsel %vm1579, 1.0, 0.0
        %v1596 = vsel %vm1580, 1.0, 0.0
        %v1597 = vsel %vm1581, 1.0, 0.0
        %v1598 = vpack.c.bf16 %v1583, %v1582
        %v1599 = vpack.c.bf16 %v1585, %v1584
        %v1600 = vpack.c.bf16 %v1587, %v1586
        %v1601 = vpack.c.bf16 %v1589, %v1588
        %v1602 = vpack.c.bf16 %v1591, %v1590
        %v1603 = vpack.c.bf16 %v1593, %v1592
        %v1604 = vpack.c.bf16 %v1595, %v1594
        %v1605 = vpack.c.bf16 %v1597, %v1596
        %s1606 = scalar_lea.vmem %s1, 160
        %v1607 = vld [vmem:[%s1606] sm:$0xf]
        %v1608 = vld [vmem:[%s1606 + $0x4] sm:$0xf]
        %v1609 = vld [vmem:[%s1606 + $0x8] sm:$0xf]
        %v1610 = vld [vmem:[%s1606 + $0xc] sm:$0xf]
        %v1611 = vld [vmem:[%s1606 + $0x10] sm:$0xf]
        %v1612 = vld [vmem:[%s1606 + $0x14] sm:$0xf]
        %v1613 = vld [vmem:[%s1606 + $0x18] sm:$0xf]
        %v1614 = vld [vmem:[%s1606 + $0x1c] sm:$0xf]
        %v1623 = vunpack.c.l.b16 %v1607
        %v1624 = vunpack.c.l.b16 %v1608
        %v1625 = vunpack.c.l.b16 %v1609
        %v1626 = vunpack.c.l.b16 %v1610
        %v1627 = vunpack.c.l.b16 %v1611
        %v1628 = vunpack.c.l.b16 %v1612
        %v1629 = vunpack.c.l.b16 %v1613
        %v1630 = vunpack.c.l.b16 %v1614
        %v1631 = vpack.c.b16 %v1624, %v1623
        %v1632 = vpack.c.b16 %v1626, %v1625
        %v1633 = vpack.c.b16 %v1628, %v1627
        %v1634 = vpack.c.b16 %v1630, %v1629
        %v1640 = vsel %vm477, %v1598, 0
        %v1643 = vsel %vm477, %v1599, 0
        %v1646 = vsel %vm477, %v1600, 0
        %v1649 = vsel %vm477, %v1601, 0
        %v1652 = vsel %vm477, %v1602, 0
        %v1655 = vsel %vm477, %v1603, 0
        %v1658 = vsel %vm477, %v1604, 0
        %v1661 = vsel %vm477, %v1605, 0
        %1663 = vmatprep.subr.bf16.mxu0 0
        %1664 = vmatpush1.bf16.msra.mxu0 0
        %1665 = vmatprep.subr.bf16.mxu0 0
        %1666 = vmatpush1.bf16.msra.mxu0 0
        %1667 = vmatprep.subr.bf16.mxu0 0
        %1668 = vmatpush1.bf16.msra.mxu0 0
        %1669 = vmatprep.subr.bf16.mxu0 0
        %1670 = vmatpush1.bf16.msra.mxu0 0
        %1671 = vmatprep.subr.bf16.mxu0 0
        %1672 = vmatpush1.bf16.msra.mxu0 %v1634
        %1673 = vmatprep.subr.bf16.mxu0 0
        %1674 = vmatpush1.bf16.msra.mxu0 %v1633
        %1675 = vmatprep.subr.bf16.mxu0 0
        %1676 = vmatpush1.bf16.msra.mxu0 %v1632
        %1677 = vmatprep.subr.bf16.mxu0 0
        %1678 = vmatpush1.bf16.msra.mxu0 %v1631
        %1679 = vmatprep.subr.bf16.mxu0 0
        %1680 = vmatpush2.bf16.msra.mxu0 0
        %1681 = vmatprep.subr.bf16.mxu0 0
        %1682 = vmatpush2.bf16.msra.mxu0 0
        %1683 = vmatprep.subr.bf16.mxu0 0
        %1684 = vmatpush2.bf16.msra.mxu0 0
        %1685 = vmatprep.subr.bf16.mxu0 0
        %1686 = vmatpush2.bf16.msra.mxu0 0
        %1687 = vmatprep.subr.bf16.mxu0 0
        %1688 = vmatpush2.bf16.msra.mxu0 0
        %1689 = vmatprep.subr.bf16.mxu0 0
        %1690 = vmatpush2.bf16.msra.mxu0 0
        %1691 = vmatprep.subr.bf16.mxu0 0
        %1692 = vmatpush2.bf16.msra.mxu0 0
        %1693 = vmatprep.subr.bf16.mxu0 0
        %1694 = vmatpush2.bf16.msra.mxu0 0
        %1695 = vmatprep.mubr.bf16.mxu0 0
        %1696 = vmatmul.mubr.bf16.gmra.mxu0 %v1640
        %v1697 = vpop.f32.mrf.mxu0
        %v1698 = vadd.f32 0.0, %v1697
        %v1699 = vpop.f32.mrf.mxu0
        %v1700 = vpop.f32.mrf.mxu0
        %v1701 = vadd.f32 0.0, %v1700
        %v1702 = vpop.f32.mrf.mxu0
        %1703 = vmatprep.mubr.bf16.mxu0 0
        %1704 = vmatmul.mubr.bf16.gmra.mxu0 %v1643
        %v1705 = vpop.f32.mrf.mxu0
        %v1706 = vadd.f32 0.0, %v1705
        %v1707 = vpop.f32.mrf.mxu0
        %v1708 = vpop.f32.mrf.mxu0
        %v1709 = vadd.f32 0.0, %v1708
        %v1710 = vpop.f32.mrf.mxu0
        %1711 = vmatprep.mubr.bf16.mxu0 0
        %1712 = vmatmul.mubr.bf16.gmra.mxu0 %v1646
        %v1713 = vpop.f32.mrf.mxu0
        %v1714 = vadd.f32 0.0, %v1713
        %v1715 = vpop.f32.mrf.mxu0
        %v1716 = vpop.f32.mrf.mxu0
        %v1717 = vadd.f32 0.0, %v1716
        %v1718 = vpop.f32.mrf.mxu0
        %1719 = vmatprep.mubr.bf16.mxu0 0
        %1720 = vmatmul.mubr.bf16.gmra.mxu0 %v1649
        %v1721 = vpop.f32.mrf.mxu0
        %v1722 = vadd.f32 0.0, %v1721
        %v1723 = vpop.f32.mrf.mxu0
        %v1724 = vpop.f32.mrf.mxu0
        %v1725 = vadd.f32 0.0, %v1724
        %v1726 = vpop.f32.mrf.mxu0
        %1727 = vmatprep.mubr.bf16.mxu0 0
        %1728 = vmatmul.mubr.bf16.gmra.mxu0 %v1652
        %v1729 = vpop.f32.mrf.mxu0
        %v1730 = vadd.f32 0.0, %v1729
        %v1731 = vpop.f32.mrf.mxu0
        %v1732 = vpop.f32.mrf.mxu0
        %v1733 = vadd.f32 0.0, %v1732
        %v1734 = vpop.f32.mrf.mxu0
        %1735 = vmatprep.mubr.bf16.mxu0 0
        %1736 = vmatmul.mubr.bf16.gmra.mxu0 %v1655
        %v1737 = vpop.f32.mrf.mxu0
        %v1738 = vadd.f32 0.0, %v1737
        %v1739 = vpop.f32.mrf.mxu0
        %v1740 = vpop.f32.mrf.mxu0
        %v1741 = vadd.f32 0.0, %v1740
        %v1742 = vpop.f32.mrf.mxu0
        %1743 = vmatprep.mubr.bf16.mxu0 0
        %1744 = vmatmul.mubr.bf16.gmra.mxu0 %v1658
        %v1745 = vpop.f32.mrf.mxu0
        %v1746 = vadd.f32 0.0, %v1745
        %v1747 = vpop.f32.mrf.mxu0
        %v1748 = vpop.f32.mrf.mxu0
        %v1749 = vadd.f32 0.0, %v1748
        %v1750 = vpop.f32.mrf.mxu0
        %1751 = vmatprep.mubr.bf16.mxu0 0
        %1752 = vmatmul.mubr.bf16.gmra.mxu0 %v1661
        %v1753 = vpop.f32.mrf.mxu0
        %v1754 = vadd.f32 0.0, %v1753
        %v1755 = vpop.f32.mrf.mxu0
        %v1756 = vpop.f32.mrf.mxu0
        %v1757 = vadd.f32 0.0, %v1756
        %v1758 = vpop.f32.mrf.mxu0
        %1759 = vdwg.mxu0
        %v1760 = vadd.f32 %v1502, %v1698
        %v1761 = vadd.f32 %v1503, %v1701
        %v1762 = vadd.f32 %v1504, %v1706
        %v1763 = vadd.f32 %v1505, %v1709
        %v1764 = vadd.f32 %v1506, %v1714
        %v1765 = vadd.f32 %v1507, %v1717
        %v1766 = vadd.f32 %v1508, %v1722
        %v1767 = vadd.f32 %v1509, %v1725
        %v1768 = vadd.f32 %v1510, %v1730
        %v1769 = vadd.f32 %v1511, %v1733
        %v1770 = vadd.f32 %v1512, %v1738
        %v1771 = vadd.f32 %v1513, %v1741
        %v1772 = vadd.f32 %v1514, %v1746
        %v1773 = vadd.f32 %v1515, %v1749
        %v1774 = vadd.f32 %v1516, %v1754
        %v1775 = vadd.f32 %v1517, %v1757
        %1776 = vset.pattern.permute.xlu0 6
        %1777 = vperm.xlu0 %1776, %v242
        %v1778 = vpop.permute.xlu0 %1777
        %1779 = vset.pattern.permute.xlu0 6
        %1780 = vperm.xlu0 %1779, %v243
        %v1781 = vpop.permute.xlu0 %1780
        %1782 = vset.pattern.permute.xlu0 6
        %1783 = vperm.xlu0 %1782, %v244
        %v1784 = vpop.permute.xlu0 %1783
        %1785 = vset.pattern.permute.xlu0 6
        %1786 = vperm.xlu0 %1785, %v245
        %v1787 = vpop.permute.xlu0 %1786
        %1788 = vset.pattern.permute.xlu0 6
        %1789 = vperm.xlu0 %1788, %v246
        %v1790 = vpop.permute.xlu0 %1789
        %1791 = vset.pattern.permute.xlu0 6
        %1792 = vperm.xlu0 %1791, %v247
        %v1793 = vpop.permute.xlu0 %1792
        %1794 = vset.pattern.permute.xlu0 6
        %1795 = vperm.xlu0 %1794, %v248
        %v1796 = vpop.permute.xlu0 %1795
        %1797 = vset.pattern.permute.xlu0 6
        %1798 = vperm.xlu0 %1797, %v249
        %v1799 = vpop.permute.xlu0 %1798
        %1800 = vset.pattern.permute.xlu0 6
        %1801 = vperm.xlu0 %1800, %v250
        %v1802 = vpop.permute.xlu0 %1801
        %1803 = vset.pattern.permute.xlu0 6
        %1804 = vperm.xlu0 %1803, %v251
        %v1805 = vpop.permute.xlu0 %1804
        %1806 = vset.pattern.permute.xlu0 6
        %1807 = vperm.xlu0 %1806, %v252
        %v1808 = vpop.permute.xlu0 %1807
        %1809 = vset.pattern.permute.xlu0 6
        %1810 = vperm.xlu0 %1809, %v253
        %v1811 = vpop.permute.xlu0 %1810
        %1812 = vset.pattern.permute.xlu0 6
        %1813 = vperm.xlu0 %1812, %v254
        %v1814 = vpop.permute.xlu0 %1813
        %1815 = vset.pattern.permute.xlu0 6
        %1816 = vperm.xlu0 %1815, %v255
        %v1817 = vpop.permute.xlu0 %1816
        %1818 = vset.pattern.permute.xlu0 6
        %1819 = vperm.xlu0 %1818, %v256
        %v1820 = vpop.permute.xlu0 %1819
        %1821 = vset.pattern.permute.xlu0 6
        %1822 = vperm.xlu0 %1821, %v257
        %v1823 = vpop.permute.xlu0 %1822
        %vm1824 = vcmp.eq.s32.totalorder %v259, %v1778
        %vm1825 = vcmp.eq.s32.totalorder %v259, %v1781
        %vm1826 = vcmp.eq.s32.totalorder %v259, %v1784
        %vm1827 = vcmp.eq.s32.totalorder %v259, %v1787
        %vm1828 = vcmp.eq.s32.totalorder %v259, %v1790
        %vm1829 = vcmp.eq.s32.totalorder %v259, %v1793
        %vm1830 = vcmp.eq.s32.totalorder %v259, %v1796
        %vm1831 = vcmp.eq.s32.totalorder %v259, %v1799
        %vm1832 = vcmp.eq.s32.totalorder %v259, %v1802
        %vm1833 = vcmp.eq.s32.totalorder %v259, %v1805
        %vm1834 = vcmp.eq.s32.totalorder %v259, %v1808
        %vm1835 = vcmp.eq.s32.totalorder %v259, %v1811
        %vm1836 = vcmp.eq.s32.totalorder %v259, %v1814
        %vm1837 = vcmp.eq.s32.totalorder %v259, %v1817
        %vm1838 = vcmp.eq.s32.totalorder %v259, %v1820
        %vm1839 = vcmp.eq.s32.totalorder %v259, %v1823
        %v1840 = vsel %vm1824, 1.0, 0.0
        %v1841 = vsel %vm1825, 1.0, 0.0
        %v1842 = vsel %vm1826, 1.0, 0.0
        %v1843 = vsel %vm1827, 1.0, 0.0
        %v1844 = vsel %vm1828, 1.0, 0.0
        %v1845 = vsel %vm1829, 1.0, 0.0
        %v1846 = vsel %vm1830, 1.0, 0.0
        %v1847 = vsel %vm1831, 1.0, 0.0
        %v1848 = vsel %vm1832, 1.0, 0.0
        %v1849 = vsel %vm1833, 1.0, 0.0
        %v1850 = vsel %vm1834, 1.0, 0.0
        %v1851 = vsel %vm1835, 1.0, 0.0
        %v1852 = vsel %vm1836, 1.0, 0.0
        %v1853 = vsel %vm1837, 1.0, 0.0
        %v1854 = vsel %vm1838, 1.0, 0.0
        %v1855 = vsel %vm1839, 1.0, 0.0
        %v1856 = vpack.c.bf16 %v1841, %v1840
        %v1857 = vpack.c.bf16 %v1843, %v1842
        %v1858 = vpack.c.bf16 %v1845, %v1844
        %v1859 = vpack.c.bf16 %v1847, %v1846
        %v1860 = vpack.c.bf16 %v1849, %v1848
        %v1861 = vpack.c.bf16 %v1851, %v1850
        %v1862 = vpack.c.bf16 %v1853, %v1852
        %v1863 = vpack.c.bf16 %v1855, %v1854
        %s1864 = scalar_lea.vmem %s1, 192
        %v1865 = vld [vmem:[%s1864] sm:$0xf]
        %v1866 = vld [vmem:[%s1864 + $0x4] sm:$0xf]
        %v1867 = vld [vmem:[%s1864 + $0x8] sm:$0xf]
        %v1868 = vld [vmem:[%s1864 + $0xc] sm:$0xf]
        %v1869 = vld [vmem:[%s1864 + $0x10] sm:$0xf]
        %v1870 = vld [vmem:[%s1864 + $0x14] sm:$0xf]
        %v1871 = vld [vmem:[%s1864 + $0x18] sm:$0xf]
        %v1872 = vld [vmem:[%s1864 + $0x1c] sm:$0xf]
        %v1881 = vunpack.c.l.b16 %v1865
        %v1882 = vunpack.c.l.b16 %v1866
        %v1883 = vunpack.c.l.b16 %v1867
        %v1884 = vunpack.c.l.b16 %v1868
        %v1885 = vunpack.c.l.b16 %v1869
        %v1886 = vunpack.c.l.b16 %v1870
        %v1887 = vunpack.c.l.b16 %v1871
        %v1888 = vunpack.c.l.b16 %v1872
        %v1889 = vpack.c.b16 %v1882, %v1881
        %v1890 = vpack.c.b16 %v1884, %v1883
        %v1891 = vpack.c.b16 %v1886, %v1885
        %v1892 = vpack.c.b16 %v1888, %v1887
        %v1898 = vsel %vm477, %v1856, 0
        %v1901 = vsel %vm477, %v1857, 0
        %v1904 = vsel %vm477, %v1858, 0
        %v1907 = vsel %vm477, %v1859, 0
        %v1910 = vsel %vm477, %v1860, 0
        %v1913 = vsel %vm477, %v1861, 0
        %v1916 = vsel %vm477, %v1862, 0
        %v1919 = vsel %vm477, %v1863, 0
        %1921 = vmatprep.subr.bf16.mxu0 0
        %1922 = vmatpush1.bf16.msra.mxu0 0
        %1923 = vmatprep.subr.bf16.mxu0 0
        %1924 = vmatpush1.bf16.msra.mxu0 0
        %1925 = vmatprep.subr.bf16.mxu0 0
        %1926 = vmatpush1.bf16.msra.mxu0 0
        %1927 = vmatprep.subr.bf16.mxu0 0
        %1928 = vmatpush1.bf16.msra.mxu0 0
        %1929 = vmatprep.subr.bf16.mxu0 0
        %1930 = vmatpush1.bf16.msra.mxu0 %v1892
        %1931 = vmatprep.subr.bf16.mxu0 0
        %1932 = vmatpush1.bf16.msra.mxu0 %v1891
        %1933 = vmatprep.subr.bf16.mxu0 0
        %1934 = vmatpush1.bf16.msra.mxu0 %v1890
        %1935 = vmatprep.subr.bf16.mxu0 0
        %1936 = vmatpush1.bf16.msra.mxu0 %v1889
        %1937 = vmatprep.subr.bf16.mxu0 0
        %1938 = vmatpush2.bf16.msra.mxu0 0
        %1939 = vmatprep.subr.bf16.mxu0 0
        %1940 = vmatpush2.bf16.msra.mxu0 0
        %1941 = vmatprep.subr.bf16.mxu0 0
        %1942 = vmatpush2.bf16.msra.mxu0 0
        %1943 = vmatprep.subr.bf16.mxu0 0
        %1944 = vmatpush2.bf16.msra.mxu0 0
        %1945 = vmatprep.subr.bf16.mxu0 0
        %1946 = vmatpush2.bf16.msra.mxu0 0
        %1947 = vmatprep.subr.bf16.mxu0 0
        %1948 = vmatpush2.bf16.msra.mxu0 0
        %1949 = vmatprep.subr.bf16.mxu0 0
        %1950 = vmatpush2.bf16.msra.mxu0 0
        %1951 = vmatprep.subr.bf16.mxu0 0
        %1952 = vmatpush2.bf16.msra.mxu0 0
        %1953 = vmatprep.mubr.bf16.mxu0 0
        %1954 = vmatmul.mubr.bf16.gmra.mxu0 %v1898
        %v1955 = vpop.f32.mrf.mxu0
        %v1956 = vadd.f32 0.0, %v1955
        %v1957 = vpop.f32.mrf.mxu0
        %v1958 = vpop.f32.mrf.mxu0
        %v1959 = vadd.f32 0.0, %v1958
        %v1960 = vpop.f32.mrf.mxu0
        %1961 = vmatprep.mubr.bf16.mxu0 0
        %1962 = vmatmul.mubr.bf16.gmra.mxu0 %v1901
        %v1963 = vpop.f32.mrf.mxu0
        %v1964 = vadd.f32 0.0, %v1963
        %v1965 = vpop.f32.mrf.mxu0
        %v1966 = vpop.f32.mrf.mxu0
        %v1967 = vadd.f32 0.0, %v1966
        %v1968 = vpop.f32.mrf.mxu0
        %1969 = vmatprep.mubr.bf16.mxu0 0
        %1970 = vmatmul.mubr.bf16.gmra.mxu0 %v1904
        %v1971 = vpop.f32.mrf.mxu0
        %v1972 = vadd.f32 0.0, %v1971
        %v1973 = vpop.f32.mrf.mxu0
        %v1974 = vpop.f32.mrf.mxu0
        %v1975 = vadd.f32 0.0, %v1974
        %v1976 = vpop.f32.mrf.mxu0
        %1977 = vmatprep.mubr.bf16.mxu0 0
        %1978 = vmatmul.mubr.bf16.gmra.mxu0 %v1907
        %v1979 = vpop.f32.mrf.mxu0
        %v1980 = vadd.f32 0.0, %v1979
        %v1981 = vpop.f32.mrf.mxu0
        %v1982 = vpop.f32.mrf.mxu0
        %v1983 = vadd.f32 0.0, %v1982
        %v1984 = vpop.f32.mrf.mxu0
        %1985 = vmatprep.mubr.bf16.mxu0 0
        %1986 = vmatmul.mubr.bf16.gmra.mxu0 %v1910
        %v1987 = vpop.f32.mrf.mxu0
        %v1988 = vadd.f32 0.0, %v1987
        %v1989 = vpop.f32.mrf.mxu0
        %v1990 = vpop.f32.mrf.mxu0
        %v1991 = vadd.f32 0.0, %v1990
        %v1992 = vpop.f32.mrf.mxu0
        %1993 = vmatprep.mubr.bf16.mxu0 0
        %1994 = vmatmul.mubr.bf16.gmra.mxu0 %v1913
        %v1995 = vpop.f32.mrf.mxu0
        %v1996 = vadd.f32 0.0, %v1995
        %v1997 = vpop.f32.mrf.mxu0
        %v1998 = vpop.f32.mrf.mxu0
        %v1999 = vadd.f32 0.0, %v1998
        %v2000 = vpop.f32.mrf.mxu0
        %2001 = vmatprep.mubr.bf16.mxu0 0
        %2002 = vmatmul.mubr.bf16.gmra.mxu0 %v1916
        %v2003 = vpop.f32.mrf.mxu0
        %v2004 = vadd.f32 0.0, %v2003
        %v2005 = vpop.f32.mrf.mxu0
        %v2006 = vpop.f32.mrf.mxu0
        %v2007 = vadd.f32 0.0, %v2006
        %v2008 = vpop.f32.mrf.mxu0
        %2009 = vmatprep.mubr.bf16.mxu0 0
        %2010 = vmatmul.mubr.bf16.gmra.mxu0 %v1919
        %v2011 = vpop.f32.mrf.mxu0
        %v2012 = vadd.f32 0.0, %v2011
        %v2013 = vpop.f32.mrf.mxu0
        %v2014 = vpop.f32.mrf.mxu0
        %v2015 = vadd.f32 0.0, %v2014
        %v2016 = vpop.f32.mrf.mxu0
        %2017 = vdwg.mxu0
        %v2018 = vadd.f32 %v1760, %v1956
        %v2019 = vadd.f32 %v1761, %v1959
        %v2020 = vadd.f32 %v1762, %v1964
        %v2021 = vadd.f32 %v1763, %v1967
        %v2022 = vadd.f32 %v1764, %v1972
        %v2023 = vadd.f32 %v1765, %v1975
        %v2024 = vadd.f32 %v1766, %v1980
        %v2025 = vadd.f32 %v1767, %v1983
        %v2026 = vadd.f32 %v1768, %v1988
        %v2027 = vadd.f32 %v1769, %v1991
        %v2028 = vadd.f32 %v1770, %v1996
        %v2029 = vadd.f32 %v1771, %v1999
        %v2030 = vadd.f32 %v1772, %v2004
        %v2031 = vadd.f32 %v1773, %v2007
        %v2032 = vadd.f32 %v1774, %v2012
        %v2033 = vadd.f32 %v1775, %v2015
        %2034 = vset.pattern.permute.xlu0 7
        %2035 = vperm.xlu0 %2034, %v242
        %v2036 = vpop.permute.xlu0 %2035
        %2037 = vset.pattern.permute.xlu0 7
        %2038 = vperm.xlu0 %2037, %v243
        %v2039 = vpop.permute.xlu0 %2038
        %2040 = vset.pattern.permute.xlu0 7
        %2041 = vperm.xlu0 %2040, %v244
        %v2042 = vpop.permute.xlu0 %2041
        %2043 = vset.pattern.permute.xlu0 7
        %2044 = vperm.xlu0 %2043, %v245
        %v2045 = vpop.permute.xlu0 %2044
        %2046 = vset.pattern.permute.xlu0 7
        %2047 = vperm.xlu0 %2046, %v246
        %v2048 = vpop.permute.xlu0 %2047
        %2049 = vset.pattern.permute.xlu0 7
        %2050 = vperm.xlu0 %2049, %v247
        %v2051 = vpop.permute.xlu0 %2050
        %2052 = vset.pattern.permute.xlu0 7
        %2053 = vperm.xlu0 %2052, %v248
        %v2054 = vpop.permute.xlu0 %2053
        %2055 = vset.pattern.permute.xlu0 7
        %2056 = vperm.xlu0 %2055, %v249
        %v2057 = vpop.permute.xlu0 %2056
        %2058 = vset.pattern.permute.xlu0 7
        %2059 = vperm.xlu0 %2058, %v250
        %v2060 = vpop.permute.xlu0 %2059
        %2061 = vset.pattern.permute.xlu0 7
        %2062 = vperm.xlu0 %2061, %v251
        %v2063 = vpop.permute.xlu0 %2062
        %2064 = vset.pattern.permute.xlu0 7
        %2065 = vperm.xlu0 %2064, %v252
        %v2066 = vpop.permute.xlu0 %2065
        %2067 = vset.pattern.permute.xlu0 7
        %2068 = vperm.xlu0 %2067, %v253
        %v2069 = vpop.permute.xlu0 %2068
        %2070 = vset.pattern.permute.xlu0 7
        %2071 = vperm.xlu0 %2070, %v254
        %v2072 = vpop.permute.xlu0 %2071
        %2073 = vset.pattern.permute.xlu0 7
        %2074 = vperm.xlu0 %2073, %v255
        %v2075 = vpop.permute.xlu0 %2074
        %2076 = vset.pattern.permute.xlu0 7
        %2077 = vperm.xlu0 %2076, %v256
        %v2078 = vpop.permute.xlu0 %2077
        %2079 = vset.pattern.permute.xlu0 7
        %2080 = vperm.xlu0 %2079, %v257
        %v2081 = vpop.permute.xlu0 %2080
        %vm2082 = vcmp.eq.s32.totalorder %v259, %v2036
        %vm2083 = vcmp.eq.s32.totalorder %v259, %v2039
        %vm2084 = vcmp.eq.s32.totalorder %v259, %v2042
        %vm2085 = vcmp.eq.s32.totalorder %v259, %v2045
        %vm2086 = vcmp.eq.s32.totalorder %v259, %v2048
        %vm2087 = vcmp.eq.s32.totalorder %v259, %v2051
        %vm2088 = vcmp.eq.s32.totalorder %v259, %v2054
        %vm2089 = vcmp.eq.s32.totalorder %v259, %v2057
        %vm2090 = vcmp.eq.s32.totalorder %v259, %v2060
        %vm2091 = vcmp.eq.s32.totalorder %v259, %v2063
        %vm2092 = vcmp.eq.s32.totalorder %v259, %v2066
        %vm2093 = vcmp.eq.s32.totalorder %v259, %v2069
        %vm2094 = vcmp.eq.s32.totalorder %v259, %v2072
        %vm2095 = vcmp.eq.s32.totalorder %v259, %v2075
        %vm2096 = vcmp.eq.s32.totalorder %v259, %v2078
        %vm2097 = vcmp.eq.s32.totalorder %v259, %v2081
        %v2098 = vsel %vm2082, 1.0, 0.0
        %v2099 = vsel %vm2083, 1.0, 0.0
        %v2100 = vsel %vm2084, 1.0, 0.0
        %v2101 = vsel %vm2085, 1.0, 0.0
        %v2102 = vsel %vm2086, 1.0, 0.0
        %v2103 = vsel %vm2087, 1.0, 0.0
        %v2104 = vsel %vm2088, 1.0, 0.0
        %v2105 = vsel %vm2089, 1.0, 0.0
        %v2106 = vsel %vm2090, 1.0, 0.0
        %v2107 = vsel %vm2091, 1.0, 0.0
        %v2108 = vsel %vm2092, 1.0, 0.0
        %v2109 = vsel %vm2093, 1.0, 0.0
        %v2110 = vsel %vm2094, 1.0, 0.0
        %v2111 = vsel %vm2095, 1.0, 0.0
        %v2112 = vsel %vm2096, 1.0, 0.0
        %v2113 = vsel %vm2097, 1.0, 0.0
        %v2114 = vpack.c.bf16 %v2099, %v2098
        %v2115 = vpack.c.bf16 %v2101, %v2100
        %v2116 = vpack.c.bf16 %v2103, %v2102
        %v2117 = vpack.c.bf16 %v2105, %v2104
        %v2118 = vpack.c.bf16 %v2107, %v2106
        %v2119 = vpack.c.bf16 %v2109, %v2108
        %v2120 = vpack.c.bf16 %v2111, %v2110
        %v2121 = vpack.c.bf16 %v2113, %v2112
        %s2122 = scalar_lea.vmem %s1, 224
        %v2123 = vld [vmem:[%s2122] sm:$0xf]
        %v2124 = vld [vmem:[%s2122 + $0x4] sm:$0xf]
        %v2125 = vld [vmem:[%s2122 + $0x8] sm:$0xf]
        %v2126 = vld [vmem:[%s2122 + $0xc] sm:$0xf]
        %v2127 = vld [vmem:[%s2122 + $0x10] sm:$0xf]
        %v2128 = vld [vmem:[%s2122 + $0x14] sm:$0xf]
        %v2129 = vld [vmem:[%s2122 + $0x18] sm:$0xf]
        %v2130 = vld [vmem:[%s2122 + $0x1c] sm:$0xf]
        %v2139 = vunpack.c.l.b16 %v2123
        %v2140 = vunpack.c.l.b16 %v2124
        %v2141 = vunpack.c.l.b16 %v2125
        %v2142 = vunpack.c.l.b16 %v2126
        %v2143 = vunpack.c.l.b16 %v2127
        %v2144 = vunpack.c.l.b16 %v2128
        %v2145 = vunpack.c.l.b16 %v2129
        %v2146 = vunpack.c.l.b16 %v2130
        %v2147 = vpack.c.b16 %v2140, %v2139
        %v2148 = vpack.c.b16 %v2142, %v2141
        %v2149 = vpack.c.b16 %v2144, %v2143
        %v2150 = vpack.c.b16 %v2146, %v2145
        %v2156 = vsel %vm477, %v2114, 0
        %v2159 = vsel %vm477, %v2115, 0
        %v2162 = vsel %vm477, %v2116, 0
        %v2165 = vsel %vm477, %v2117, 0
        %v2168 = vsel %vm477, %v2118, 0
        %v2171 = vsel %vm477, %v2119, 0
        %v2174 = vsel %vm477, %v2120, 0
        %v2177 = vsel %vm477, %v2121, 0
        %2179 = vmatprep.subr.bf16.mxu0 0
        %2180 = vmatpush1.bf16.msra.mxu0 0
        %2181 = vmatprep.subr.bf16.mxu0 0
        %2182 = vmatpush1.bf16.msra.mxu0 0
        %2183 = vmatprep.subr.bf16.mxu0 0
        %2184 = vmatpush1.bf16.msra.mxu0 0
        %2185 = vmatprep.subr.bf16.mxu0 0
        %2186 = vmatpush1.bf16.msra.mxu0 0
        %2187 = vmatprep.subr.bf16.mxu0 0
        %2188 = vmatpush1.bf16.msra.mxu0 %v2150
        %2189 = vmatprep.subr.bf16.mxu0 0
        %2190 = vmatpush1.bf16.msra.mxu0 %v2149
        %2191 = vmatprep.subr.bf16.mxu0 0
        %2192 = vmatpush1.bf16.msra.mxu0 %v2148
        %2193 = vmatprep.subr.bf16.mxu0 0
        %2194 = vmatpush1.bf16.msra.mxu0 %v2147
        %2195 = vmatprep.subr.bf16.mxu0 0
        %2196 = vmatpush2.bf16.msra.mxu0 0
        %2197 = vmatprep.subr.bf16.mxu0 0
        %2198 = vmatpush2.bf16.msra.mxu0 0
        %2199 = vmatprep.subr.bf16.mxu0 0
        %2200 = vmatpush2.bf16.msra.mxu0 0
        %2201 = vmatprep.subr.bf16.mxu0 0
        %2202 = vmatpush2.bf16.msra.mxu0 0
        %2203 = vmatprep.subr.bf16.mxu0 0
        %2204 = vmatpush2.bf16.msra.mxu0 0
        %2205 = vmatprep.subr.bf16.mxu0 0
        %2206 = vmatpush2.bf16.msra.mxu0 0
        %2207 = vmatprep.subr.bf16.mxu0 0
        %2208 = vmatpush2.bf16.msra.mxu0 0
        %2209 = vmatprep.subr.bf16.mxu0 0
        %2210 = vmatpush2.bf16.msra.mxu0 0
        %2211 = vmatprep.mubr.bf16.mxu0 0
        %2212 = vmatmul.mubr.bf16.gmra.mxu0 %v2156
        %v2213 = vpop.f32.mrf.mxu0
        %v2214 = vadd.f32 0.0, %v2213
        %v2215 = vpop.f32.mrf.mxu0
        %v2216 = vpop.f32.mrf.mxu0
        %v2217 = vadd.f32 0.0, %v2216
        %v2218 = vpop.f32.mrf.mxu0
        %2219 = vmatprep.mubr.bf16.mxu0 0
        %2220 = vmatmul.mubr.bf16.gmra.mxu0 %v2159
        %v2221 = vpop.f32.mrf.mxu0
        %v2222 = vadd.f32 0.0, %v2221
        %v2223 = vpop.f32.mrf.mxu0
        %v2224 = vpop.f32.mrf.mxu0
        %v2225 = vadd.f32 0.0, %v2224
        %v2226 = vpop.f32.mrf.mxu0
        %2227 = vmatprep.mubr.bf16.mxu0 0
        %2228 = vmatmul.mubr.bf16.gmra.mxu0 %v2162
        %v2229 = vpop.f32.mrf.mxu0
        %v2230 = vadd.f32 0.0, %v2229
        %v2231 = vpop.f32.mrf.mxu0
        %v2232 = vpop.f32.mrf.mxu0
        %v2233 = vadd.f32 0.0, %v2232
        %v2234 = vpop.f32.mrf.mxu0
        %2235 = vmatprep.mubr.bf16.mxu0 0
        %2236 = vmatmul.mubr.bf16.gmra.mxu0 %v2165
        %v2237 = vpop.f32.mrf.mxu0
        %v2238 = vadd.f32 0.0, %v2237
        %v2239 = vpop.f32.mrf.mxu0
        %v2240 = vpop.f32.mrf.mxu0
        %v2241 = vadd.f32 0.0, %v2240
        %v2242 = vpop.f32.mrf.mxu0
        %2243 = vmatprep.mubr.bf16.mxu0 0
        %2244 = vmatmul.mubr.bf16.gmra.mxu0 %v2168
        %v2245 = vpop.f32.mrf.mxu0
        %v2246 = vadd.f32 0.0, %v2245
        %v2247 = vpop.f32.mrf.mxu0
        %v2248 = vpop.f32.mrf.mxu0
        %v2249 = vadd.f32 0.0, %v2248
        %v2250 = vpop.f32.mrf.mxu0
        %2251 = vmatprep.mubr.bf16.mxu0 0
        %2252 = vmatmul.mubr.bf16.gmra.mxu0 %v2171
        %v2253 = vpop.f32.mrf.mxu0
        %v2254 = vadd.f32 0.0, %v2253
        %v2255 = vpop.f32.mrf.mxu0
        %v2256 = vpop.f32.mrf.mxu0
        %v2257 = vadd.f32 0.0, %v2256
        %v2258 = vpop.f32.mrf.mxu0
        %2259 = vmatprep.mubr.bf16.mxu0 0
        %2260 = vmatmul.mubr.bf16.gmra.mxu0 %v2174
        %v2261 = vpop.f32.mrf.mxu0
        %v2262 = vadd.f32 0.0, %v2261
        %v2263 = vpop.f32.mrf.mxu0
        %v2264 = vpop.f32.mrf.mxu0
        %v2265 = vadd.f32 0.0, %v2264
        %v2266 = vpop.f32.mrf.mxu0
        %2267 = vmatprep.mubr.bf16.mxu0 0
        %2268 = vmatmul.mubr.bf16.gmra.mxu0 %v2177
        %v2269 = vpop.f32.mrf.mxu0
        %v2270 = vadd.f32 0.0, %v2269
        %v2271 = vpop.f32.mrf.mxu0
        %v2272 = vpop.f32.mrf.mxu0
        %v2273 = vadd.f32 0.0, %v2272
        %v2274 = vpop.f32.mrf.mxu0
        %2275 = vdwg.mxu0
        %v2276 = vadd.f32 %v2018, %v2214
        %v2277 = vadd.f32 %v2019, %v2217
        %v2278 = vadd.f32 %v2020, %v2222
        %v2279 = vadd.f32 %v2021, %v2225
        %v2280 = vadd.f32 %v2022, %v2230
        %v2281 = vadd.f32 %v2023, %v2233
        %v2282 = vadd.f32 %v2024, %v2238
        %v2283 = vadd.f32 %v2025, %v2241
        %v2284 = vadd.f32 %v2026, %v2246
        %v2285 = vadd.f32 %v2027, %v2249
        %v2286 = vadd.f32 %v2028, %v2254
        %v2287 = vadd.f32 %v2029, %v2257
        %v2288 = vadd.f32 %v2030, %v2262
        %v2289 = vadd.f32 %v2031, %v2265
        %v2290 = vadd.f32 %v2032, %v2270
        %v2291 = vadd.f32 %v2033, %v2273
        %v2292 = vld [vmem:[%s2] sm:$0x1]
        %v2294 = vlaneseq
        %v2295 = vshrl.u32 %v2294, 7
        %v2296 = vsub.s32 0, %v2295
        %v2297 = vrot.slane %v2292, %v2296
        %v2299 = vadd.f32 %v2276, %v2297
        %v2300 = vadd.f32 %v2277, %v2297
        %v2301 = vadd.f32 %v2278, %v2297
        %v2302 = vadd.f32 %v2279, %v2297
        %v2303 = vadd.f32 %v2280, %v2297
        %v2304 = vadd.f32 %v2281, %v2297
        %v2305 = vadd.f32 %v2282, %v2297
        %v2306 = vadd.f32 %v2283, %v2297
        %v2307 = vadd.f32 %v2284, %v2297
        %v2308 = vadd.f32 %v2285, %v2297
        %v2309 = vadd.f32 %v2286, %v2297
        %v2310 = vadd.f32 %v2287, %v2297
        %v2311 = vadd.f32 %v2288, %v2297
        %v2312 = vadd.f32 %v2289, %v2297
        %v2313 = vadd.f32 %v2290, %v2297
        %v2314 = vadd.f32 %v2291, %v2297
        %v2315 = vmax.f32 %v2299, 0.0
        %v2316 = vmax.f32 %v2300, 0.0
        %v2317 = vmax.f32 %v2301, 0.0
        %v2318 = vmax.f32 %v2302, 0.0
        %v2319 = vmax.f32 %v2303, 0.0
        %v2320 = vmax.f32 %v2304, 0.0
        %v2321 = vmax.f32 %v2305, 0.0
        %v2322 = vmax.f32 %v2306, 0.0
        %v2323 = vmax.f32 %v2307, 0.0
        %v2324 = vmax.f32 %v2308, 0.0
        %v2325 = vmax.f32 %v2309, 0.0
        %v2326 = vmax.f32 %v2310, 0.0
        %v2327 = vmax.f32 %v2311, 0.0
        %v2328 = vmax.f32 %v2312, 0.0
        %v2329 = vmax.f32 %v2313, 0.0
        %v2330 = vmax.f32 %v2314, 0.0
        %v2331 = vpack.c.bf16 %v2316, %v2315
        %v2332 = vpack.c.bf16 %v2318, %v2317
        %v2333 = vpack.c.bf16 %v2320, %v2319
        %v2334 = vpack.c.bf16 %v2322, %v2321
        %v2335 = vpack.c.bf16 %v2324, %v2323
        %v2336 = vpack.c.bf16 %v2326, %v2325
        %v2337 = vpack.c.bf16 %v2328, %v2327
        %v2338 = vpack.c.bf16 %v2330, %v2329
        %v2339 = vld [vmem:[#allocation2] sm:$0xf]
        %v2340 = vld [vmem:[#allocation2 + $0x4] sm:$0xf]
        %v2341 = vld [vmem:[#allocation2 + $0x8] sm:$0xf]
        %v2342 = vld [vmem:[#allocation2 + $0xc] sm:$0xf]
        %v2343 = vld [vmem:[#allocation2 + $0x10] sm:$0xf]
        %v2344 = vld [vmem:[#allocation2 + $0x14] sm:$0xf]
        %v2345 = vld [vmem:[#allocation2 + $0x18] sm:$0xf]
        %v2346 = vld [vmem:[#allocation2 + $0x1c] sm:$0xf]
        %v2347 = vld [vmem:[#allocation2 + $0x20] sm:$0xf]
        %v2348 = vld [vmem:[#allocation2 + $0x24] sm:$0xf]
        %v2349 = vld [vmem:[#allocation2 + $0x28] sm:$0xf]
        %v2350 = vld [vmem:[#allocation2 + $0x2c] sm:$0xf]
        %v2351 = vld [vmem:[#allocation2 + $0x30] sm:$0xf]
        %v2352 = vld [vmem:[#allocation2 + $0x34] sm:$0xf]
        %v2353 = vld [vmem:[#allocation2 + $0x38] sm:$0xf]
        %v2354 = vld [vmem:[#allocation2 + $0x3c] sm:$0xf]
        %v2355 = vld [vmem:[%s4] sm:$0x1]
        %v2357 = vlaneseq
        %v2358 = vshrl.u32 %v2357, 7
        %v2359 = vsub.s32 0, %v2358
        %v2360 = vrot.slane %v2355, %v2359
        %v2378 = vunpack.c.l.b16 %v2339
        %v2379 = vunpack.c.l.b16 %v2340
        %v2380 = vunpack.c.l.b16 %v2341
        %v2381 = vunpack.c.l.b16 %v2342
        %v2382 = vunpack.c.l.b16 %v2343
        %v2383 = vunpack.c.l.b16 %v2344
        %v2384 = vunpack.c.l.b16 %v2345
        %v2385 = vunpack.c.l.b16 %v2346
        %v2386 = vunpack.c.l.b16 %v2347
        %v2387 = vunpack.c.l.b16 %v2348
        %v2388 = vunpack.c.l.b16 %v2349
        %v2389 = vunpack.c.l.b16 %v2350
        %v2390 = vunpack.c.l.b16 %v2351
        %v2391 = vunpack.c.l.b16 %v2352
        %v2392 = vunpack.c.l.b16 %v2353
        %v2393 = vunpack.c.l.b16 %v2354
        %v2394 = vpack.c.b16 %v2379, %v2378
        %v2395 = vpack.c.b16 %v2381, %v2380
        %v2396 = vpack.c.b16 %v2383, %v2382
        %v2397 = vpack.c.b16 %v2385, %v2384
        %v2398 = vpack.c.b16 %v2387, %v2386
        %v2399 = vpack.c.b16 %v2389, %v2388
        %v2400 = vpack.c.b16 %v2391, %v2390
        %v2401 = vpack.c.b16 %v2393, %v2392
        %2410 = vmatprep.subr.bf16.mxu0 0
        %2411 = vmatpush1.bf16.msra.mxu0 %v2401
        %2412 = vmatprep.subr.bf16.mxu0 0
        %2413 = vmatpush1.bf16.msra.mxu0 %v2400
        %2414 = vmatprep.subr.bf16.mxu0 0
        %2415 = vmatpush1.bf16.msra.mxu0 %v2399
        %2416 = vmatprep.subr.bf16.mxu0 0
        %2417 = vmatpush1.bf16.msra.mxu0 %v2398
        %2418 = vmatprep.subr.bf16.mxu0 0
        %2419 = vmatpush1.bf16.msra.mxu0 %v2397
        %2420 = vmatprep.subr.bf16.mxu0 0
        %2421 = vmatpush1.bf16.msra.mxu0 %v2396
        %2422 = vmatprep.subr.bf16.mxu0 0
        %2423 = vmatpush1.bf16.msra.mxu0 %v2395
        %2424 = vmatprep.subr.bf16.mxu0 0
        %2425 = vmatpush1.bf16.msra.mxu0 %v2394
        %2426 = vmatprep.subr.bf16.mxu0 0
        %2427 = vmatpush2.bf16.msra.mxu0 0
        %2428 = vmatprep.subr.bf16.mxu0 0
        %2429 = vmatpush2.bf16.msra.mxu0 0
        %2430 = vmatprep.subr.bf16.mxu0 0
        %2431 = vmatpush2.bf16.msra.mxu0 0
        %2432 = vmatprep.subr.bf16.mxu0 0
        %2433 = vmatpush2.bf16.msra.mxu0 0
        %2434 = vmatprep.subr.bf16.mxu0 0
        %2435 = vmatpush2.bf16.msra.mxu0 0
        %2436 = vmatprep.subr.bf16.mxu0 0
        %2437 = vmatpush2.bf16.msra.mxu0 0
        %2438 = vmatprep.subr.bf16.mxu0 0
        %2439 = vmatpush2.bf16.msra.mxu0 0
        %2440 = vmatprep.subr.bf16.mxu0 0
        %2441 = vmatpush2.bf16.msra.mxu0 0
        %2442 = vmatprep.mubr.bf16.mxu0 0
        %2443 = vmatmul.mubr.bf16.gmra.mxu0 %v2331
        %v2444 = vpop.f32.mrf.mxu0
        %v2445 = vadd.f32 %v2360, %v2444
        %v2446 = vpop.f32.mrf.mxu0
        %v2447 = vpop.f32.mrf.mxu0
        %v2448 = vadd.f32 %v2360, %v2447
        %v2449 = vpop.f32.mrf.mxu0
        %2450 = vmatprep.mubr.bf16.mxu0 0
        %2451 = vmatmul.mubr.bf16.gmra.mxu0 %v2332
        %v2452 = vpop.f32.mrf.mxu0
        %v2453 = vadd.f32 %v2360, %v2452
        %v2454 = vpop.f32.mrf.mxu0
        %v2455 = vpop.f32.mrf.mxu0
        %v2456 = vadd.f32 %v2360, %v2455
        %v2457 = vpop.f32.mrf.mxu0
        %2458 = vmatprep.mubr.bf16.mxu0 0
        %2459 = vmatmul.mubr.bf16.gmra.mxu0 %v2333
        %v2460 = vpop.f32.mrf.mxu0
        %v2461 = vadd.f32 %v2360, %v2460
        %v2462 = vpop.f32.mrf.mxu0
        %v2463 = vpop.f32.mrf.mxu0
        %v2464 = vadd.f32 %v2360, %v2463
        %v2465 = vpop.f32.mrf.mxu0
        %2466 = vmatprep.mubr.bf16.mxu0 0
        %2467 = vmatmul.mubr.bf16.gmra.mxu0 %v2334
        %v2468 = vpop.f32.mrf.mxu0
        %v2469 = vadd.f32 %v2360, %v2468
        %v2470 = vpop.f32.mrf.mxu0
        %v2471 = vpop.f32.mrf.mxu0
        %v2472 = vadd.f32 %v2360, %v2471
        %v2473 = vpop.f32.mrf.mxu0
        %2474 = vmatprep.mubr.bf16.mxu0 0
        %2475 = vmatmul.mubr.bf16.gmra.mxu0 %v2335
        %v2476 = vpop.f32.mrf.mxu0
        %v2477 = vadd.f32 %v2360, %v2476
        %v2478 = vpop.f32.mrf.mxu0
        %v2479 = vpop.f32.mrf.mxu0
        %v2480 = vadd.f32 %v2360, %v2479
        %v2481 = vpop.f32.mrf.mxu0
        %2482 = vmatprep.mubr.bf16.mxu0 0
        %2483 = vmatmul.mubr.bf16.gmra.mxu0 %v2336
        %v2484 = vpop.f32.mrf.mxu0
        %v2485 = vadd.f32 %v2360, %v2484
        %v2486 = vpop.f32.mrf.mxu0
        %v2487 = vpop.f32.mrf.mxu0
        %v2488 = vadd.f32 %v2360, %v2487
        %v2489 = vpop.f32.mrf.mxu0
        %2490 = vmatprep.mubr.bf16.mxu0 0
        %2491 = vmatmul.mubr.bf16.gmra.mxu0 %v2337
        %v2492 = vpop.f32.mrf.mxu0
        %v2493 = vadd.f32 %v2360, %v2492
        %v2494 = vpop.f32.mrf.mxu0
        %v2495 = vpop.f32.mrf.mxu0
        %v2496 = vadd.f32 %v2360, %v2495
        %v2497 = vpop.f32.mrf.mxu0
        %2498 = vmatprep.mubr.bf16.mxu0 0
        %2499 = vmatmul.mubr.bf16.gmra.mxu0 %v2338
        %v2500 = vpop.f32.mrf.mxu0
        %v2501 = vadd.f32 %v2360, %v2500
        %v2502 = vpop.f32.mrf.mxu0
        %v2503 = vpop.f32.mrf.mxu0
        %v2504 = vadd.f32 %v2360, %v2503
        %v2505 = vpop.f32.mrf.mxu0
        %2506 = vdwg.mxu0
        %2507 = vmax.xlane.f32.xlu0 %v2445
        %v2508 = vpop.xlane.xlu0 %2507
        %2509 = vmax.xlane.f32.xlu0 %v2448
        %v2510 = vpop.xlane.xlu0 %2509
        %2511 = vmax.xlane.f32.xlu0 %v2453
        %v2512 = vpop.xlane.xlu0 %2511
        %2513 = vmax.xlane.f32.xlu0 %v2456
        %v2514 = vpop.xlane.xlu0 %2513
        %2515 = vmax.xlane.f32.xlu0 %v2461
        %v2516 = vpop.xlane.xlu0 %2515
        %2517 = vmax.xlane.f32.xlu0 %v2464
        %v2518 = vpop.xlane.xlu0 %2517
        %2519 = vmax.xlane.f32.xlu0 %v2469
        %v2520 = vpop.xlane.xlu0 %2519
        %2521 = vmax.xlane.f32.xlu0 %v2472
        %v2522 = vpop.xlane.xlu0 %2521
        %2523 = vmax.xlane.f32.xlu0 %v2477
        %v2524 = vpop.xlane.xlu0 %2523
        %2525 = vmax.xlane.f32.xlu0 %v2480
        %v2526 = vpop.xlane.xlu0 %2525
        %2527 = vmax.xlane.f32.xlu0 %v2485
        %v2528 = vpop.xlane.xlu0 %2527
        %2529 = vmax.xlane.f32.xlu0 %v2488
        %v2530 = vpop.xlane.xlu0 %2529
        %2531 = vmax.xlane.f32.xlu0 %v2493
        %v2532 = vpop.xlane.xlu0 %2531
        %2533 = vmax.xlane.f32.xlu0 %v2496
        %v2534 = vpop.xlane.xlu0 %2533
        %2535 = vmax.xlane.f32.xlu0 %v2501
        %v2536 = vpop.xlane.xlu0 %2535
        %2537 = vmax.xlane.f32.xlu0 %v2504
        %v2538 = vpop.xlane.xlu0 %2537
        %v2539 = vsub.f32 %v2445, %v2508
        %v2540 = vsub.f32 %v2448, %v2510
        %v2541 = vsub.f32 %v2453, %v2512
        %v2542 = vsub.f32 %v2456, %v2514
        %v2543 = vsub.f32 %v2461, %v2516
        %v2544 = vsub.f32 %v2464, %v2518
        %v2545 = vsub.f32 %v2469, %v2520
        %v2546 = vsub.f32 %v2472, %v2522
        %v2547 = vsub.f32 %v2477, %v2524
        %v2548 = vsub.f32 %v2480, %v2526
        %v2549 = vsub.f32 %v2485, %v2528
        %v2550 = vsub.f32 %v2488, %v2530
        %v2551 = vsub.f32 %v2493, %v2532
        %v2552 = vsub.f32 %v2496, %v2534
        %v2553 = vsub.f32 %v2501, %v2536
        %v2554 = vsub.f32 %v2504, %v2538
        %v2555 = vmul.f32 %v2539, 1.442695
        %v2556 = vpow.pop %v2555
        %v2557 = vmul.f32 %v2540, 1.442695
        %v2558 = vpow.pop %v2557
        %v2559 = vmul.f32 %v2541, 1.442695
        %v2560 = vpow.pop %v2559
        %v2561 = vmul.f32 %v2542, 1.442695
        %v2562 = vpow.pop %v2561
        %v2563 = vmul.f32 %v2543, 1.442695
        %v2564 = vpow.pop %v2563
        %v2565 = vmul.f32 %v2544, 1.442695
        %v2566 = vpow.pop %v2565
        %v2567 = vmul.f32 %v2545, 1.442695
        %v2568 = vpow.pop %v2567
        %v2569 = vmul.f32 %v2546, 1.442695
        %v2570 = vpow.pop %v2569
        %v2571 = vmul.f32 %v2547, 1.442695
        %v2572 = vpow.pop %v2571
        %v2573 = vmul.f32 %v2548, 1.442695
        %v2574 = vpow.pop %v2573
        %v2575 = vmul.f32 %v2549, 1.442695
        %v2576 = vpow.pop %v2575
        %v2577 = vmul.f32 %v2550, 1.442695
        %v2578 = vpow.pop %v2577
        %v2579 = vmul.f32 %v2551, 1.442695
        %v2580 = vpow.pop %v2579
        %v2581 = vmul.f32 %v2552, 1.442695
        %v2582 = vpow.pop %v2581
        %v2583 = vmul.f32 %v2553, 1.442695
        %v2584 = vpow.pop %v2583
        %v2585 = vmul.f32 %v2554, 1.442695
        %v2586 = vpow.pop %v2585
        %2587 = vadd.xlane.f32.xlu0 %v2556
        %v2588 = vpop.xlane.xlu0 %2587
        %2589 = vadd.xlane.f32.xlu0 %v2558
        %v2590 = vpop.xlane.xlu0 %2589
        %2591 = vadd.xlane.f32.xlu0 %v2560
        %v2592 = vpop.xlane.xlu0 %2591
        %2593 = vadd.xlane.f32.xlu0 %v2562
        %v2594 = vpop.xlane.xlu0 %2593
        %2595 = vadd.xlane.f32.xlu0 %v2564
        %v2596 = vpop.xlane.xlu0 %2595
        %2597 = vadd.xlane.f32.xlu0 %v2566
        %v2598 = vpop.xlane.xlu0 %2597
        %2599 = vadd.xlane.f32.xlu0 %v2568
        %v2600 = vpop.xlane.xlu0 %2599
        %2601 = vadd.xlane.f32.xlu0 %v2570
        %v2602 = vpop.xlane.xlu0 %2601
        %2603 = vadd.xlane.f32.xlu0 %v2572
        %v2604 = vpop.xlane.xlu0 %2603
        %2605 = vadd.xlane.f32.xlu0 %v2574
        %v2606 = vpop.xlane.xlu0 %2605
        %2607 = vadd.xlane.f32.xlu0 %v2576
        %v2608 = vpop.xlane.xlu0 %2607
        %2609 = vadd.xlane.f32.xlu0 %v2578
        %v2610 = vpop.xlane.xlu0 %2609
        %2611 = vadd.xlane.f32.xlu0 %v2580
        %v2612 = vpop.xlane.xlu0 %2611
        %2613 = vadd.xlane.f32.xlu0 %v2582
        %v2614 = vpop.xlane.xlu0 %2613
        %2615 = vadd.xlane.f32.xlu0 %v2584
        %v2616 = vpop.xlane.xlu0 %2615
        %2617 = vadd.xlane.f32.xlu0 %v2586
        %v2618 = vpop.xlane.xlu0 %2617
        %v2619 = vlog2.pop %v2588
        %v2620 = vmul.f32 %v2619, 0.6931472
        %v2621 = vlog2.pop %v2590
        %v2622 = vmul.f32 %v2621, 0.6931472
        %v2623 = vlog2.pop %v2592
        %v2624 = vmul.f32 %v2623, 0.6931472
        %v2625 = vlog2.pop %v2594
        %v2626 = vmul.f32 %v2625, 0.6931472
        %v2627 = vlog2.pop %v2596
        %v2628 = vmul.f32 %v2627, 0.6931472
        %v2629 = vlog2.pop %v2598
        %v2630 = vmul.f32 %v2629, 0.6931472
        %v2631 = vlog2.pop %v2600
        %v2632 = vmul.f32 %v2631, 0.6931472
        %v2633 = vlog2.pop %v2602
        %v2634 = vmul.f32 %v2633, 0.6931472
        %v2635 = vlog2.pop %v2604
        %v2636 = vmul.f32 %v2635, 0.6931472
        %v2637 = vlog2.pop %v2606
        %v2638 = vmul.f32 %v2637, 0.6931472
        %v2639 = vlog2.pop %v2608
        %v2640 = vmul.f32 %v2639, 0.6931472
        %v2641 = vlog2.pop %v2610
        %v2642 = vmul.f32 %v2641, 0.6931472
        %v2643 = vlog2.pop %v2612
        %v2644 = vmul.f32 %v2643, 0.6931472
        %v2645 = vlog2.pop %v2614
        %v2646 = vmul.f32 %v2645, 0.6931472
        %v2647 = vlog2.pop %v2616
        %v2648 = vmul.f32 %v2647, 0.6931472
        %v2649 = vlog2.pop %v2618
        %v2650 = vmul.f32 %v2649, 0.6931472
        %v2651 = vsub.f32 %v2539, %v2620
        %v2652 = vsub.f32 %v2540, %v2622
        %v2653 = vsub.f32 %v2541, %v2624
        %v2654 = vsub.f32 %v2542, %v2626
        %v2655 = vsub.f32 %v2543, %v2628
        %v2656 = vsub.f32 %v2544, %v2630
        %v2657 = vsub.f32 %v2545, %v2632
        %v2658 = vsub.f32 %v2546, %v2634
        %v2659 = vsub.f32 %v2547, %v2636
        %v2660 = vsub.f32 %v2548, %v2638
        %v2661 = vsub.f32 %v2549, %v2640
        %v2662 = vsub.f32 %v2550, %v2642
        %v2663 = vsub.f32 %v2551, %v2644
        %v2664 = vsub.f32 %v2552, %v2646
        %v2665 = vsub.f32 %v2553, %v2648
        %v2666 = vsub.f32 %v2554, %v2650
        %2667 = vst [vmem:[%s233] sm:$0xff] %v2651
        %2668 = vst [vmem:[%s233 + $0x8] sm:$0xff] %v2652
        %2669 = vst [vmem:[%s233 + $0x10] sm:$0xff] %v2653
        %2670 = vst [vmem:[%s233 + $0x18] sm:$0xff] %v2654
        %2671 = vst [vmem:[%s233 + $0x20] sm:$0xff] %v2655
        %2672 = vst [vmem:[%s233 + $0x28] sm:$0xff] %v2656
        %2673 = vst [vmem:[%s233 + $0x30] sm:$0xff] %v2657
        %2674 = vst [vmem:[%s233 + $0x38] sm:$0xff] %v2658
        %2675 = vst [vmem:[%s233 + $0x40] sm:$0xff] %v2659
        %2676 = vst [vmem:[%s233 + $0x48] sm:$0xff] %v2660
        %2677 = vst [vmem:[%s233 + $0x50] sm:$0xff] %v2661
        %2678 = vst [vmem:[%s233 + $0x58] sm:$0xff] %v2662
        %2679 = vst [vmem:[%s233 + $0x60] sm:$0xff] %v2663
        %2680 = vst [vmem:[%s233 + $0x68] sm:$0xff] %v2664
        %2681 = vst [vmem:[%s233 + $0x70] sm:$0xff] %v2665
        %2682 = vst [vmem:[%s233 + $0x78] sm:$0xff] %v2666
        %s2683 = sand.u32 %s138, 1
        %s2684 = scalar_lea.sflag [#allocation4], %s2683
        %s2685 = sand.u32 %s138, 1
        %s2686 = smul.addr %s2685, 128
        %s2687 = scalar_lea.vmem [#allocation5], %s2686
        // Predicated region
        $region45: #{tpu_custom_call.1} parent=39 // pred_check
          %p2688 = pneg %p148
        $region46: #{tpu_custom_call.1} parent=39 // pred_check_branch
          %2690 = sbr.rel (%p2688) target = $region48
        $region47: #{tpu_custom_call.1} parent=39 // pred_region
          %s2691 = smul.u32 16, %s20
          %s2693 = ssub.s32 2048, 2048
          %2694 = vsyncadd %s2684, %s2693
          %s2695 = smul.addr %s2691, 128
          %s2696 = scalar_lea.hbm %s5, %s2695
          %s2697 = sshll.u32 %s2687, 4
          %s2698 = int_to_ptr.vmem [resolvable:$true] %s2697
          %2703 = dma.vmem_to_hbm [thread:$0]  %s2698, 2048, %s2696, %s2684, 128, 128, 8
        $region48: #{tpu_custom_call.1} parent=39 // pred_fallthru
          _
      $region40: #{tpu_custom_call.1} parent=5 // pred_fallthru
        _
      %p2704 = scmp.le.s32.totalorder 2, %s15
      // Predicated region
      $region49: #{tpu_custom_call.1} parent=5 // pred_check
        %p2705 = pneg %p2704
      $region50: #{tpu_custom_call.1} parent=5 // pred_check_branch
        %2707 = sbr.rel (%p2705) target = $region52
      $region51: #{tpu_custom_call.1} parent=5 // pred_region
        %s2708 = ssub.s32 %s15, 2
        // Predicated region
        $region53: #{tpu_custom_call.1} parent=51 // pred_check
          %p2709 = pneg %p154
        $region54: #{tpu_custom_call.1} parent=51 // pred_check_branch
          %2711 = sbr.rel (%p2709) target = $region56
        $region55: #{tpu_custom_call.1} parent=51 // pred_region
          %s2712 = sand.u32 %s139, 1
          %s2713 = scalar_lea.sflag [#allocation4], %s2712
          %s2714 = sand.u32 %s139, 1
          %s2715 = smul.addr %s2714, 128
          %s2716 = scalar_lea.vmem [#allocation5], %s2715
          %2717 = dma.done %s2713, 2048
        $region56: #{tpu_custom_call.1} parent=51 // pred_fallthru
          _
      $region52: #{tpu_custom_call.1} parent=5 // pred_fallthru
        _
    $region6: #{tpu_custom_call.1} parent=1 // loop_footer
      %s19 = sadd.s32 1, %s15
    $region7: #{tpu_custom_call.1} parent=1 // loop_footer_branch
      %14 = sbr.rel target = $region3
    $region8: #{tpu_custom_call.1} parent=1 // loop_exit
      _
    %2718 = vsyncpa [#allocation3], 1
    %s2719 = scalar_lea.sflag [#allocation3], 1
    %2720 = vsyncpa %s2719, 1
    %2721 = vsyncpa [#allocation4], 1
    %s2722 = scalar_lea.sflag [#allocation4], 1
    %2723 = vsyncpa %s2722, 1

</llo_original>
